<compile_context>
chip_gen: v5e
topology: v5e:2x2
jax: 0.10.0
libtpu: 0.0.40
codegen_flags: <defaults>
</compile_context>

<pallas_src>
import jax
import jax.numpy as jnp
from jax.experimental import pallas as pl
from jax.experimental.pallas import tpu as pltpu

# ----------------------- small, deterministic hyperparameters -----------------
DEPTH = 2        # number of DSS layers
N_STATE = 8      # SSM state size n
H = 32           # hidden size h
VOCAB = 50       # vocab_size
OUT = 10         # out_size
B = 2            # batch
L = 16           # sequence length


def _gelu(x):
    # tanh-approximate GELU (lowers cleanly to VPU/EUP).
    return jax.nn.gelu(x, approximate=True)


# ------------------------------- fused Pallas kernel ---------------------------
def s4_fused_kernel(x_ref, mask_ref, toep_ref, d_ref, w1_ref, b1_ref,
                    g_ref, beta_ref, wout_ref, bout_ref, o_ref):
    """Whole S4 forward (DEPTH DSS blocks + head) in one invocation.

    x_ref    : (B*L, H)              flattened token embeddings
    mask_ref : (B, B*L)              one-hot selector of the last valid row
    toep_ref : (DEPTH, B*L, B*L, H)  block-diagonal causal Toeplitz conv taps
    d_ref    : (DEPTH, 1, H)         "D" skip parameter
    w1_ref   : (DEPTH, H, H)         output mixing weight (x @ W)
    b1_ref   : (DEPTH, 1, H)         output mixing bias
    g_ref    : (DEPTH, 1, H)         LayerNorm gamma
    beta_ref : (DEPTH, 1, H)         LayerNorm beta
    wout_ref : (H, OUT)              head weight
    bout_ref : (1, OUT)              head bias
    o_ref    : (B, OUT)              output logits
    """
    x = x_ref[...]                                           # (B*L, H)

    for d in range(DEPTH):                                   # static unroll
        u = x
        # causal DSS conv: conv[l, h] = sum_m T[l, m, h] * u[m, h]
        # (one dense VPU multiply + one sublane reduction; T is block-diagonal
        #  over batches, so no cross-batch mixing).
        conv = jnp.sum(toep_ref[d] * u[None, :, :], axis=1)  # (B*L, H)
        acc = u * d_ref[d] + conv

        # position-wise output path + residual + LayerNorm
        z = _gelu(acc)
        z = jnp.dot(z, w1_ref[d], preferred_element_type=jnp.float32) + b1_ref[d]
        r = z + u
        mean = jnp.mean(r, axis=-1, keepdims=True)
        var = jnp.mean(jnp.square(r - mean), axis=-1, keepdims=True)
        x = (r - mean) * jax.lax.rsqrt(var + 1e-5) * g_ref[d] + beta_ref[d]

    # head: one-hot gather of the last valid token, GELU, Linear(H, OUT)
    last = jnp.dot(mask_ref[...], x, preferred_element_type=jnp.float32)  # (B, H)
    y = jnp.dot(_gelu(last), wout_ref[...],
                preferred_element_type=jnp.float32) + bout_ref[...]
    o_ref[...] = y.astype(o_ref.dtype)


def s4_fused(x_flat, mask, toep, d_skip, w1, b1, gamma, beta, w_out, b_out):
    bsz = mask.shape[0]
    out_size = w_out.shape[1]
    vmem = lambda: pl.BlockSpec(memory_space=pltpu.MemorySpace.VMEM)
    return pl.pallas_call(
        s4_fused_kernel,
        out_shape=jax.ShapeDtypeStruct((bsz, out_size), x_flat.dtype),
        in_specs=[vmem() for _ in range(10)],
        out_specs=vmem(),
    )(x_flat, mask, toep, d_skip, w1, b1, gamma, beta, w_out, b_out)


# --------------------------- parameter construction ---------------------------
def init_params(key):
    keys = jax.random.split(key, 2 + DEPTH)
    emb = 0.1 * jax.random.normal(keys[0], (VOCAB, H), jnp.float32)

    # indices for the block-diagonal causal Toeplitz over the flattened (B*L)
    # sequence axis: T[row, col, h] = K[pos(row) - pos(col), h] iff same batch
    # and pos(row) >= pos(col), else 0.
    flat = jnp.arange(B * L)
    batch_id = flat // L
    pos = flat % L
    diff = pos[:, None] - pos[None, :]                       # (B*L, B*L)
    valid = (batch_id[:, None] == batch_id[None, :]) & (diff >= 0)

    toep_l, d_l, w1_l, b1_l, g_l, beta_l = [], [], [], [], [], []
    t = jnp.arange(L, dtype=jnp.float32)
    for d in range(DEPTH):
        lk = jax.random.split(keys[2 + d], 6)
        w_re = jax.random.normal(lk[0], (H, N_STATE), jnp.float32)
        w_im = jax.random.normal(lk[1], (H, N_STATE), jnp.float32)
        log_dt = jax.random.uniform(lk[2], (H,), jnp.float32,
                                    minval=jnp.log(1e-3), maxval=jnp.log(1e-1))
        dt = jnp.exp(log_dt)
        lam_re = -0.5 * jnp.ones((N_STATE,), jnp.float32)
        lam_im = jnp.pi * jnp.arange(N_STATE, dtype=jnp.float32)

        # DSS conv kernel taps (parameter setup, plain JAX):
        #   K[l, h] = Re( sum_n W[h, n] * exp(Lambda[n] * dt[h] * l) ) / N
        phase = t[:, None, None] * dt[None, :, None]             # (L, H, 1)
        decay = jnp.exp(lam_re[None, None, :] * phase)           # (L, H, N)
        ang = lam_im[None, None, :] * phase                      # (L, H, N)
        k_taps = jnp.sum(
            decay * (w_re[None] * jnp.cos(ang) - w_im[None] * jnp.sin(ang)),
            axis=-1) / N_STATE                                   # (L, H)

        toep = jnp.where(valid[:, :, None],
                         k_taps[jnp.clip(diff, 0, L - 1)],
                         0.0)                                    # (B*L, B*L, H)
        toep_l.append(toep)
        d_l.append(jax.random.normal(lk[3], (1, H), jnp.float32))
        w1_l.append(jax.random.normal(lk[4], (H, H), jnp.float32) / jnp.sqrt(H))
        b1_l.append(jnp.zeros((1, H), jnp.float32))
        g_l.append(jnp.ones((1, H), jnp.float32))
        beta_l.append(jnp.zeros((1, H), jnp.float32))

    w_out = jax.random.normal(keys[1], (H, OUT), jnp.float32) / jnp.sqrt(H)
    b_out = jnp.zeros((1, OUT), jnp.float32)
    return (emb, jnp.stack(toep_l), jnp.stack(d_l), jnp.stack(w1_l),
            jnp.stack(b1_l), jnp.stack(g_l), jnp.stack(beta_l), w_out, b_out)


# --------------------------------- forward ------------------------------------
def s4_forward(params, tokens, lengths):
    emb, toep, d_skip, w1, b1, gamma, beta, w_out, b_out = params
    bsz, seq = tokens.shape
    # nn.Embedding gather — plain-JAX glue; activations kept flattened (B*L, H).
    x = jnp.take(emb, tokens.reshape(-1), axis=0)
    # one-hot selector for x[b, lengths[b] - 1, :] on the flattened layout
    # (lengths clamped so length 0 cannot produce a negative index).
    idx = jnp.clip(lengths - 1, 0, seq - 1)
    flat_idx = jnp.arange(bsz) * seq + idx
    mask = jax.nn.one_hot(flat_idx, bsz * seq, dtype=x.dtype)   # (B, B*L)
    return s4_fused(x, mask, toep, d_skip, w1, b1, gamma, beta, w_out, b_out)


def s4_reference(params, tokens, lengths):
    """Pure-JAX reference in (B, L, H) form (sanity check for the kernel)."""
    emb, toep, d_skip, w1, b1, gamma, beta, w_out, b_out = params
    bsz, seq = tokens.shape
    x = jnp.take(emb, tokens, axis=0)                            # (B, L, H)
    for d in range(DEPTH):
        u = x
        T = toep[d, :seq, :seq, :]        # first diagonal block = per-batch taps
        conv = jnp.einsum('lmh,bmh->blh', T, u)
        acc = u * d_skip[d][None] + conv
        z = _gelu(acc)
        z = jnp.einsum('blh,hk->blk', z, w1[d]) + b1[d][None]
        r = z + u
        mean = jnp.mean(r, axis=-1, keepdims=True)
        var = jnp.mean(jnp.square(r - mean), axis=-1, keepdims=True)
        x = (r - mean) * jax.lax.rsqrt(var + 1e-5) * gamma[d][None] + beta[d][None]
    idx = jnp.clip(lengths - 1, 0, seq - 1)
    last = x[jnp.arange(bsz), idx, :]
    return jnp.dot(_gelu(last), w_out) + b_out


# ----------------------------------- main --------------------------------------
if __name__ == "__main__":
    key = jax.random.PRNGKey(0)
    pkey, tkey = jax.random.split(key)
    params = init_params(pkey)

    tokens = jax.random.randint(tkey, (B, L), 0, VOCAB, dtype=jnp.int32)
    x_lengths = jnp.array([L, L // 2 + 1], dtype=jnp.int32)

    forward = jax.jit(s4_forward)
    out = jax.block_until_ready(forward(params, tokens, x_lengths))

    assert out.shape == (B, OUT), out.shape
    assert bool(jnp.all(jnp.isfinite(out)))

    ref = s4_reference(params, tokens, x_lengths)
    assert bool(jnp.allclose(out, ref, atol=1e-2, rtol=1e-2)), (
        "Pallas output does not match JAX reference")

    print("KERNEL_OK")
</pallas_src>

<mosaic_0001>
module attributes {stable_mosaic.version = 11 : i64} {
  func.func @s4_fused_kernel(%arg0: memref<32x32xf32, #tpu.memory_space<vmem>>, %arg1: memref<2x32xf32, #tpu.memory_space<vmem>>, %arg2: memref<2x32x32x32xf32, #tpu.memory_space<vmem>>, %arg3: memref<2x1x32xf32, #tpu.memory_space<vmem>>, %arg4: memref<2x32x32xf32, #tpu.memory_space<vmem>>, %arg5: memref<2x1x32xf32, #tpu.memory_space<vmem>>, %arg6: memref<2x1x32xf32, #tpu.memory_space<vmem>>, %arg7: memref<2x1x32xf32, #tpu.memory_space<vmem>>, %arg8: memref<32x10xf32, #tpu.memory_space<vmem>>, %arg9: memref<1x10xf32, #tpu.memory_space<vmem>>, %arg10: memref<2x10xf32, #tpu.memory_space<vmem>>) attributes {dimension_semantics = [], scalar_prefetch = 0 : i64, scratch_operands = 0 : i64, tpu.core_type = #tpu.core_type<tc>} {
    %c0 = arith.constant 0 : index
    %c0_0 = arith.constant 0 : index
    %0 = vector.load %arg0[%c0, %c0_0] : memref<32x32xf32, #tpu.memory_space<vmem>>, vector<32x32xf32>
    %c0_1 = arith.constant 0 : index
    %c0_2 = arith.constant 0 : index
    %c0_3 = arith.constant 0 : index
    %c0_4 = arith.constant 0 : index
    %1 = vector.load %arg2[%c0_1, %c0_2, %c0_3, %c0_4] : memref<2x32x32x32xf32, #tpu.memory_space<vmem>>, vector<1x32x32x32xf32>
    %2 = vector.shape_cast %1 : vector<1x32x32x32xf32> to vector<32x32x32xf32>
    %3 = vector.shape_cast %0 : vector<32x32xf32> to vector<1x32x32xf32>
    %4 = vector.broadcast %3 : vector<1x32x32xf32> to vector<32x32x32xf32>
    %5 = arith.mulf %2, %4 : vector<32x32x32xf32>
    %cst = arith.constant dense<0.000000e+00> : vector<32x32xf32>
    %6 = vector.multi_reduction <add>, %5, %cst [1] : vector<32x32x32xf32> to vector<32x32xf32>
    %c0_5 = arith.constant 0 : index
    %c0_6 = arith.constant 0 : index
    %c0_7 = arith.constant 0 : index
    %7 = vector.load %arg3[%c0_5, %c0_6, %c0_7] : memref<2x1x32xf32, #tpu.memory_space<vmem>>, vector<1x1x32xf32>
    %8 = vector.shape_cast %7 : vector<1x1x32xf32> to vector<1x32xf32>
    %9 = vector.broadcast %8 : vector<1x32xf32> to vector<32x32xf32>
    %10 = arith.mulf %0, %9 : vector<32x32xf32>
    %11 = arith.addf %10, %6 : vector<32x32xf32>
    %12 = arith.mulf %11, %11 : vector<32x32xf32>
    %13 = arith.mulf %11, %12 : vector<32x32xf32>
    %cst_8 = arith.constant 4.471500e-02 : f32
    %14 = vector.broadcast %cst_8 : f32 to vector<32x32xf32>
    %15 = arith.mulf %14, %13 : vector<32x32xf32>
    %16 = arith.addf %11, %15 : vector<32x32xf32>
    %cst_9 = arith.constant 0.797884583 : f32
    %17 = vector.broadcast %cst_9 : f32 to vector<32x32xf32>
    %18 = arith.mulf %17, %16 : vector<32x32xf32>
    %19 = math.tanh %18 : vector<32x32xf32>
    %cst_10 = arith.constant 1.000000e+00 : f32
    %20 = vector.broadcast %cst_10 : f32 to vector<32x32xf32>
    %21 = arith.addf %20, %19 : vector<32x32xf32>
    %cst_11 = arith.constant 5.000000e-01 : f32
    %22 = vector.broadcast %cst_11 : f32 to vector<32x32xf32>
    %23 = arith.mulf %22, %21 : vector<32x32xf32>
    %24 = arith.mulf %11, %23 : vector<32x32xf32>
    %c0_12 = arith.constant 0 : index
    %c0_13 = arith.constant 0 : index
    %c0_14 = arith.constant 0 : index
    %25 = vector.load %arg4[%c0_12, %c0_13, %c0_14] : memref<2x32x32xf32, #tpu.memory_space<vmem>>, vector<1x32x32xf32>
    %26 = vector.shape_cast %25 : vector<1x32x32xf32> to vector<32x32xf32>
    %cst_15 = arith.constant dense<0.000000e+00> : vector<32x32xf32>
    %27 = tpu.matmul %24, %26, %cst_15 {dimension_numbers = #tpu.dot_dimension_numbers<[1], [0], [0], [1], [0, 0, 1, 1], [], []>} : vector<32x32xf32>, vector<32x32xf32>, vector<32x32xf32> -> vector<32x32xf32>
    %c0_16 = arith.constant 0 : index
    %c0_17 = arith.constant 0 : index
    %c0_18 = arith.constant 0 : index
    %28 = vector.load %arg5[%c0_16, %c0_17, %c0_18] : memref<2x1x32xf32, #tpu.memory_space<vmem>>, vector<1x1x32xf32>
    %29 = vector.shape_cast %28 : vector<1x1x32xf32> to vector<1x32xf32>
    %30 = vector.broadcast %29 : vector<1x32xf32> to vector<32x32xf32>
    %31 = arith.addf %27, %30 : vector<32x32xf32>
    %32 = arith.addf %31, %0 : vector<32x32xf32>
    %cst_19 = arith.constant dense<0.000000e+00> : vector<32xf32>
    %33 = vector.multi_reduction <add>, %32, %cst_19 [1] : vector<32x32xf32> to vector<32xf32>
    %34 = vector.shape_cast %33 : vector<32xf32> to vector<32x1xf32>
    %cst_20 = arith.constant 3.200000e+01 : f32
    %35 = vector.broadcast %cst_20 : f32 to vector<32x1xf32>
    %36 = arith.divf %34, %35 : vector<32x1xf32>
    %37 = vector.broadcast %36 : vector<32x1xf32> to vector<32x32xf32>
    %38 = arith.subf %32, %37 : vector<32x32xf32>
    %39 = arith.mulf %38, %38 : vector<32x32xf32>
    %cst_21 = arith.constant dense<0.000000e+00> : vector<32xf32>
    %40 = vector.multi_reduction <add>, %39, %cst_21 [1] : vector<32x32xf32> to vector<32xf32>
    %41 = vector.shape_cast %40 : vector<32xf32> to vector<32x1xf32>
    %cst_22 = arith.constant 3.200000e+01 : f32
    %42 = vector.broadcast %cst_22 : f32 to vector<32x1xf32>
    %43 = arith.divf %41, %42 : vector<32x1xf32>
    %44 = vector.broadcast %36 : vector<32x1xf32> to vector<32x32xf32>
    %45 = arith.subf %32, %44 : vector<32x32xf32>
    %cst_23 = arith.constant 9.99999974E-6 : f32
    %46 = vector.broadcast %cst_23 : f32 to vector<32x1xf32>
    %47 = arith.addf %43, %46 : vector<32x1xf32>
    %48 = math.rsqrt %47 : vector<32x1xf32>
    %49 = vector.broadcast %48 : vector<32x1xf32> to vector<32x32xf32>
    %50 = arith.mulf %45, %49 : vector<32x32xf32>
    %c0_24 = arith.constant 0 : index
    %c0_25 = arith.constant 0 : index
    %c0_26 = arith.constant 0 : index
    %51 = vector.load %arg6[%c0_24, %c0_25, %c0_26] : memref<2x1x32xf32, #tpu.memory_space<vmem>>, vector<1x1x32xf32>
    %52 = vector.shape_cast %51 : vector<1x1x32xf32> to vector<1x32xf32>
    %53 = vector.broadcast %52 : vector<1x32xf32> to vector<32x32xf32>
    %54 = arith.mulf %50, %53 : vector<32x32xf32>
    %c0_27 = arith.constant 0 : index
    %c0_28 = arith.constant 0 : index
    %c0_29 = arith.constant 0 : index
    %55 = vector.load %arg7[%c0_27, %c0_28, %c0_29] : memref<2x1x32xf32, #tpu.memory_space<vmem>>, vector<1x1x32xf32>
    %56 = vector.shape_cast %55 : vector<1x1x32xf32> to vector<1x32xf32>
    %57 = vector.broadcast %56 : vector<1x32xf32> to vector<32x32xf32>
    %58 = arith.addf %54, %57 : vector<32x32xf32>
    %c1 = arith.constant 1 : index
    %c0_30 = arith.constant 0 : index
    %c0_31 = arith.constant 0 : index
    %c0_32 = arith.constant 0 : index
    %59 = vector.load %arg2[%c1, %c0_30, %c0_31, %c0_32] : memref<2x32x32x32xf32, #tpu.memory_space<vmem>>, vector<1x32x32x32xf32>
    %60 = vector.shape_cast %59 : vector<1x32x32x32xf32> to vector<32x32x32xf32>
    %61 = vector.shape_cast %58 : vector<32x32xf32> to vector<1x32x32xf32>
    %62 = vector.broadcast %61 : vector<1x32x32xf32> to vector<32x32x32xf32>
    %63 = arith.mulf %60, %62 : vector<32x32x32xf32>
    %cst_33 = arith.constant dense<0.000000e+00> : vector<32x32xf32>
    %64 = vector.multi_reduction <add>, %63, %cst_33 [1] : vector<32x32x32xf32> to vector<32x32xf32>
    %c1_34 = arith.constant 1 : index
    %c0_35 = arith.constant 0 : index
    %c0_36 = arith.constant 0 : index
    %65 = vector.load %arg3[%c1_34, %c0_35, %c0_36] : memref<2x1x32xf32, #tpu.memory_space<vmem>>, vector<1x1x32xf32>
    %66 = vector.shape_cast %65 : vector<1x1x32xf32> to vector<1x32xf32>
    %67 = vector.broadcast %66 : vector<1x32xf32> to vector<32x32xf32>
    %68 = arith.mulf %58, %67 : vector<32x32xf32>
    %69 = arith.addf %68, %64 : vector<32x32xf32>
    %70 = arith.mulf %69, %69 : vector<32x32xf32>
    %71 = arith.mulf %69, %70 : vector<32x32xf32>
    %cst_37 = arith.constant 4.471500e-02 : f32
    %72 = vector.broadcast %cst_37 : f32 to vector<32x32xf32>
    %73 = arith.mulf %72, %71 : vector<32x32xf32>
    %74 = arith.addf %69, %73 : vector<32x32xf32>
    %cst_38 = arith.constant 0.797884583 : f32
    %75 = vector.broadcast %cst_38 : f32 to vector<32x32xf32>
    %76 = arith.mulf %75, %74 : vector<32x32xf32>
    %77 = math.tanh %76 : vector<32x32xf32>
    %cst_39 = arith.constant 1.000000e+00 : f32
    %78 = vector.broadcast %cst_39 : f32 to vector<32x32xf32>
    %79 = arith.addf %78, %77 : vector<32x32xf32>
    %cst_40 = arith.constant 5.000000e-01 : f32
    %80 = vector.broadcast %cst_40 : f32 to vector<32x32xf32>
    %81 = arith.mulf %80, %79 : vector<32x32xf32>
    %82 = arith.mulf %69, %81 : vector<32x32xf32>
    %c1_41 = arith.constant 1 : index
    %c0_42 = arith.constant 0 : index
    %c0_43 = arith.constant 0 : index
    %83 = vector.load %arg4[%c1_41, %c0_42, %c0_43] : memref<2x32x32xf32, #tpu.memory_space<vmem>>, vector<1x32x32xf32>
    %84 = vector.shape_cast %83 : vector<1x32x32xf32> to vector<32x32xf32>
    %cst_44 = arith.constant dense<0.000000e+00> : vector<32x32xf32>
    %85 = tpu.matmul %82, %84, %cst_44 {dimension_numbers = #tpu.dot_dimension_numbers<[1], [0], [0], [1], [0, 0, 1, 1], [], []>} : vector<32x32xf32>, vector<32x32xf32>, vector<32x32xf32> -> vector<32x32xf32>
    %c1_45 = arith.constant 1 : index
    %c0_46 = arith.constant 0 : index
    %c0_47 = arith.constant 0 : index
    %86 = vector.load %arg5[%c1_45, %c0_46, %c0_47] : memref<2x1x32xf32, #tpu.memory_space<vmem>>, vector<1x1x32xf32>
    %87 = vector.shape_cast %86 : vector<1x1x32xf32> to vector<1x32xf32>
    %88 = vector.broadcast %87 : vector<1x32xf32> to vector<32x32xf32>
    %89 = arith.addf %85, %88 : vector<32x32xf32>
    %90 = arith.addf %89, %58 : vector<32x32xf32>
    %cst_48 = arith.constant dense<0.000000e+00> : vector<32xf32>
    %91 = vector.multi_reduction <add>, %90, %cst_48 [1] : vector<32x32xf32> to vector<32xf32>
    %92 = vector.shape_cast %91 : vector<32xf32> to vector<32x1xf32>
    %cst_49 = arith.constant 3.200000e+01 : f32
    %93 = vector.broadcast %cst_49 : f32 to vector<32x1xf32>
    %94 = arith.divf %92, %93 : vector<32x1xf32>
    %95 = vector.broadcast %94 : vector<32x1xf32> to vector<32x32xf32>
    %96 = arith.subf %90, %95 : vector<32x32xf32>
    %97 = arith.mulf %96, %96 : vector<32x32xf32>
    %cst_50 = arith.constant dense<0.000000e+00> : vector<32xf32>
    %98 = vector.multi_reduction <add>, %97, %cst_50 [1] : vector<32x32xf32> to vector<32xf32>
    %99 = vector.shape_cast %98 : vector<32xf32> to vector<32x1xf32>
    %cst_51 = arith.constant 3.200000e+01 : f32
    %100 = vector.broadcast %cst_51 : f32 to vector<32x1xf32>
    %101 = arith.divf %99, %100 : vector<32x1xf32>
    %102 = vector.broadcast %94 : vector<32x1xf32> to vector<32x32xf32>
    %103 = arith.subf %90, %102 : vector<32x32xf32>
    %cst_52 = arith.constant 9.99999974E-6 : f32
    %104 = vector.broadcast %cst_52 : f32 to vector<32x1xf32>
    %105 = arith.addf %101, %104 : vector<32x1xf32>
    %106 = math.rsqrt %105 : vector<32x1xf32>
    %107 = vector.broadcast %106 : vector<32x1xf32> to vector<32x32xf32>
    %108 = arith.mulf %103, %107 : vector<32x32xf32>
    %c1_53 = arith.constant 1 : index
    %c0_54 = arith.constant 0 : index
    %c0_55 = arith.constant 0 : index
    %109 = vector.load %arg6[%c1_53, %c0_54, %c0_55] : memref<2x1x32xf32, #tpu.memory_space<vmem>>, vector<1x1x32xf32>
    %110 = vector.shape_cast %109 : vector<1x1x32xf32> to vector<1x32xf32>
    %111 = vector.broadcast %110 : vector<1x32xf32> to vector<32x32xf32>
    %112 = arith.mulf %108, %111 : vector<32x32xf32>
    %c1_56 = arith.constant 1 : index
    %c0_57 = arith.constant 0 : index
    %c0_58 = arith.constant 0 : index
    %113 = vector.load %arg7[%c1_56, %c0_57, %c0_58] : memref<2x1x32xf32, #tpu.memory_space<vmem>>, vector<1x1x32xf32>
    %114 = vector.shape_cast %113 : vector<1x1x32xf32> to vector<1x32xf32>
    %115 = vector.broadcast %114 : vector<1x32xf32> to vector<32x32xf32>
    %116 = arith.addf %112, %115 : vector<32x32xf32>
    %c0_59 = arith.constant 0 : index
    %c0_60 = arith.constant 0 : index
    %117 = vector.load %arg1[%c0_59, %c0_60] : memref<2x32xf32, #tpu.memory_space<vmem>>, vector<2x32xf32>
    %cst_61 = arith.constant dense<0.000000e+00> : vector<2x32xf32>
    %118 = tpu.matmul %117, %116, %cst_61 {dimension_numbers = #tpu.dot_dimension_numbers<[1], [0], [0], [1], [0, 0, 1, 1], [], []>} : vector<2x32xf32>, vector<32x32xf32>, vector<2x32xf32> -> vector<2x32xf32>
    %119 = arith.mulf %118, %118 : vector<2x32xf32>
    %120 = arith.mulf %118, %119 : vector<2x32xf32>
    %cst_62 = arith.constant 4.471500e-02 : f32
    %121 = vector.broadcast %cst_62 : f32 to vector<2x32xf32>
    %122 = arith.mulf %121, %120 : vector<2x32xf32>
    %123 = arith.addf %118, %122 : vector<2x32xf32>
    %cst_63 = arith.constant 0.797884583 : f32
    %124 = vector.broadcast %cst_63 : f32 to vector<2x32xf32>
    %125 = arith.mulf %124, %123 : vector<2x32xf32>
    %126 = math.tanh %125 : vector<2x32xf32>
    %cst_64 = arith.constant 1.000000e+00 : f32
    %127 = vector.broadcast %cst_64 : f32 to vector<2x32xf32>
    %128 = arith.addf %127, %126 : vector<2x32xf32>
    %cst_65 = arith.constant 5.000000e-01 : f32
    %129 = vector.broadcast %cst_65 : f32 to vector<2x32xf32>
    %130 = arith.mulf %129, %128 : vector<2x32xf32>
    %131 = arith.mulf %118, %130 : vector<2x32xf32>
    %c0_66 = arith.constant 0 : index
    %c0_67 = arith.constant 0 : index
    %132 = vector.load %arg8[%c0_66, %c0_67] : memref<32x10xf32, #tpu.memory_space<vmem>>, vector<32x10xf32>
    %cst_68 = arith.constant dense<0.000000e+00> : vector<2x10xf32>
    %133 = tpu.matmul %131, %132, %cst_68 {dimension_numbers = #tpu.dot_dimension_numbers<[1], [0], [0], [1], [0, 0, 1, 1], [], []>} : vector<2x32xf32>, vector<32x10xf32>, vector<2x10xf32> -> vector<2x10xf32>
    %c0_69 = arith.constant 0 : index
    %c0_70 = arith.constant 0 : index
    %134 = vector.load %arg9[%c0_69, %c0_70] : memref<1x10xf32, #tpu.memory_space<vmem>>, vector<1x10xf32>
    %135 = vector.broadcast %134 : vector<1x10xf32> to vector<2x10xf32>
    %136 = arith.addf %133, %135 : vector<2x10xf32>
    %c0_71 = arith.constant 0 : index
    %c0_72 = arith.constant 0 : index
    %137 = vector.load %arg10[%c0_71, %c0_72] : memref<2x10xf32, #tpu.memory_space<vmem>>, vector<2x10xf32>
    tpu.vector_store %arg10[%c0_71, %c0_72], %136 {strides = array<i32>} : memref<2x10xf32, #tpu.memory_space<vmem>>, vector<2x10xf32>,
    return
  }
}

</mosaic_0001>

<llo_original>
// kernel: s4_forward.1
$region0: #{s4_forward.1}
  #allocation0 [shape = 'u32[]', space=smem, size = 0x4, offset = 0x4, fixed_abs, tag = 'smem constant byte address 0x4 - core index']
  #allocation1 [shape = 'u32[72,128]{1,0:T(1,128)}', space=vmem, size = 0x9000, scoped, tag = 'internal scratch']
  %s0 = inlined_call_operand.vmem [shape: f32[32,32], index: 0, kind: input, shape index: {}]
  %s1 = inlined_call_operand.vmem [shape: f32[2,32], index: 1, kind: input, shape index: {}]
  %s2 = inlined_call_operand.hbm [shape: f32[2,32,32,32], index: 2, kind: input, shape index: {}]
  %s3 = inlined_call_operand.vmem [shape: f32[2,1,32], index: 3, kind: input, shape index: {}]
  %s4 = inlined_call_operand.vmem [shape: f32[2,32,32], index: 4, kind: input, shape index: {}]
  %s5 = inlined_call_operand.vmem [shape: f32[2,1,32], index: 5, kind: input, shape index: {}]
  %s6 = inlined_call_operand.vmem [shape: f32[2,1,32], index: 6, kind: input, shape index: {}]
  %s7 = inlined_call_operand.vmem [shape: f32[2,1,32], index: 7, kind: input, shape index: {}]
  %s8 = inlined_call_operand.vmem [shape: f32[32,10], index: 8, kind: input, shape index: {}]
  %s9 = inlined_call_operand.vmem [shape: f32[1,10], index: 9, kind: input, shape index: {}]
  %s10 = inlined_call_operand.hbm [shape: f32[2,10], index: 10, kind: output, shape index: {}]
  %s11 = sld [smem:[#allocation0]]
  $region54: #{s4_forward.1} parent=0
    _
  %s13 = ssub.s32 1, %s11
  %s14 = scalar_select 0, %s13, %s11
  $region1: #{s4_forward.1} parent=0
    #allocation2 [shape = 'u8[1048576]{0}', space=vmem, size = 0x100000, scoped, tag = 'input window, operand 2, single buffered']
    #allocation3 [shape = 's32[1]{0}', space=sflag, size = 0x4, scoped, tag = 'scoped memory for s4_forward.1']
    #allocation4 [shape = 's32[1]{0}', space=sflag, size = 0x4, scoped, tag = 'scoped memory for s4_forward.1']
    #allocation5 [shape = 'u8[1024]{0}', space=vmem, size = 0x400, scoped, tag = 'output window, operand 0, single buffered']
    %15 = vsyncpa [#allocation3], 0
    %16 = vsyncpa [#allocation4], 0
    // Predicated region
    $region2: #{s4_forward.1} parent=1 // pred_check
      _
    $region3: #{s4_forward.1} parent=1 // pred_check_branch
      %18 = sbr.rel (0) target = $region5
    $region4: #{s4_forward.1} parent=1 // pred_region
      _
    $region5: #{s4_forward.1} parent=1 // pred_fallthru
      _
    // Predicated region
    $region6: #{s4_forward.1} parent=1 // pred_check
      _
    $region7: #{s4_forward.1} parent=1 // pred_check_branch
      %20 = sbr.rel (0) target = $region9
    $region8: #{s4_forward.1} parent=1 // pred_region
      _
    $region9: #{s4_forward.1} parent=1 // pred_fallthru
      _
    // Predicated region
    $region10: #{s4_forward.1} parent=1 // pred_check
      _
    $region11: #{s4_forward.1} parent=1 // pred_check_branch
      %22 = sbr.rel (0) target = $region13
    $region12: #{s4_forward.1} parent=1 // pred_region
      %24 = vsyncadd [#allocation3], 0
      %s25 = sshll.u32 %s2, 4
      %s26 = int_to_ptr.hbm [resolvable:$true] %s25
      %s27 = sshll.u32 [#allocation2], 4
      %s28 = int_to_ptr.vmem [resolvable:$true] %s27
      %33 = dma.hbm_to_vmem [thread:$0]  %s26, 32768, %s28, [#allocation3], 128, 128, 8
    $region13: #{s4_forward.1} parent=1 // pred_fallthru
      _
    // Predicated region
    $region14: #{s4_forward.1} parent=1 // pred_check
      _
    $region15: #{s4_forward.1} parent=1 // pred_check_branch
      %35 = sbr.rel (0) target = $region17
    $region16: #{s4_forward.1} parent=1 // pred_region
      _
    $region17: #{s4_forward.1} parent=1 // pred_fallthru
      _
    // Predicated region
    $region18: #{s4_forward.1} parent=1 // pred_check
      _
    $region19: #{s4_forward.1} parent=1 // pred_check_branch
      %37 = sbr.rel (0) target = $region21
    $region20: #{s4_forward.1} parent=1 // pred_region
      _
    $region21: #{s4_forward.1} parent=1 // pred_fallthru
      _
    // Predicated region
    $region22: #{s4_forward.1} parent=1 // pred_check
      _
    $region23: #{s4_forward.1} parent=1 // pred_check_branch
      %39 = sbr.rel (0) target = $region25
    $region24: #{s4_forward.1} parent=1 // pred_region
      _
    $region25: #{s4_forward.1} parent=1 // pred_fallthru
      _
    // Predicated region
    $region26: #{s4_forward.1} parent=1 // pred_check
      _
    $region27: #{s4_forward.1} parent=1 // pred_check_branch
      %41 = sbr.rel (0) target = $region29
    $region28: #{s4_forward.1} parent=1 // pred_region
      _
    $region29: #{s4_forward.1} parent=1 // pred_fallthru
      _
    // Predicated region
    $region30: #{s4_forward.1} parent=1 // pred_check
      _
    $region31: #{s4_forward.1} parent=1 // pred_check_branch
      %43 = sbr.rel (0) target = $region33
    $region32: #{s4_forward.1} parent=1 // pred_region
      _
    $region33: #{s4_forward.1} parent=1 // pred_fallthru
      _
    // Predicated region
    $region34: #{s4_forward.1} parent=1 // pred_check
      _
    $region35: #{s4_forward.1} parent=1 // pred_check_branch
      %45 = sbr.rel (0) target = $region37
    $region36: #{s4_forward.1} parent=1 // pred_region
      _
    $region37: #{s4_forward.1} parent=1 // pred_fallthru
      _
    // Predicated region
    $region38: #{s4_forward.1} parent=1 // pred_check
      _
    $region39: #{s4_forward.1} parent=1 // pred_check_branch
      %47 = sbr.rel (0) target = $region41
    $region40: #{s4_forward.1} parent=1 // pred_region
      _
    $region41: #{s4_forward.1} parent=1 // pred_fallthru
      _
    // Predicated region
    $region42: #{s4_forward.1} parent=1 // pred_check
      _
    $region43: #{s4_forward.1} parent=1 // pred_check_branch
      %49 = sbr.rel (0) target = $region45
    $region44: #{s4_forward.1} parent=1 // pred_region
      %51 = dma.done [#allocation3], 32768
    $region45: #{s4_forward.1} parent=1 // pred_fallthru
      _
    %v52 = vld [vmem:[%s0] sm:$0xff]
    %v53 = vld [vmem:[%s0 + $0x8] sm:$0xff]
    %v54 = vld [vmem:[%s0 + $0x10] sm:$0xff]
    %v55 = vld [vmem:[%s0 + $0x18] sm:$0xff]
    %v56 = vld [vmem:[#allocation2] sm:$0xff]
    %v57 = vld [vmem:[#allocation2 + $0x8] sm:$0xff]
    %v58 = vld [vmem:[#allocation2 + $0x10] sm:$0xff]
    %v59 = vld [vmem:[#allocation2 + $0x18] sm:$0xff]
    %v60 = vld [vmem:[#allocation2 + $0x20] sm:$0xff]
    %v61 = vld [vmem:[#allocation2 + $0x28] sm:$0xff]
    %v62 = vld [vmem:[#allocation2 + $0x30] sm:$0xff]
    %v63 = vld [vmem:[#allocation2 + $0x38] sm:$0xff]
    %v64 = vld [vmem:[#allocation2 + $0x40] sm:$0xff]
    %v65 = vld [vmem:[#allocation2 + $0x48] sm:$0xff]
    %v66 = vld [vmem:[#allocation2 + $0x50] sm:$0xff]
    %v67 = vld [vmem:[#allocation2 + $0x58] sm:$0xff]
    %v68 = vld [vmem:[#allocation2 + $0x60] sm:$0xff]
    %v69 = vld [vmem:[#allocation2 + $0x68] sm:$0xff]
    %v70 = vld [vmem:[#allocation2 + $0x70] sm:$0xff]
    %v71 = vld [vmem:[#allocation2 + $0x78] sm:$0xff]
    %v72 = vld [vmem:[#allocation2 + $0x80] sm:$0xff]
    %v73 = vld [vmem:[#allocation2 + $0x88] sm:$0xff]
    %v74 = vld [vmem:[#allocation2 + $0x90] sm:$0xff]
    %v75 = vld [vmem:[#allocation2 + $0x98] sm:$0xff]
    %v76 = vld [vmem:[#allocation2 + $0xa0] sm:$0xff]
    %v77 = vld [vmem:[#allocation2 + $0xa8] sm:$0xff]
    %v78 = vld [vmem:[#allocation2 + $0xb0] sm:$0xff]
    %v79 = vld [vmem:[#allocation2 + $0xb8] sm:$0xff]
    %v80 = vld [vmem:[#allocation2 + $0xc0] sm:$0xff]
    %v81 = vld [vmem:[#allocation2 + $0xc8] sm:$0xff]
    %v82 = vld [vmem:[#allocation2 + $0xd0] sm:$0xff]
    %v83 = vld [vmem:[#allocation2 + $0xd8] sm:$0xff]
    %v84 = vld [vmem:[#allocation2 + $0xe0] sm:$0xff]
    %v85 = vld [vmem:[#allocation2 + $0xe8] sm:$0xff]
    %v86 = vld [vmem:[#allocation2 + $0xf0] sm:$0xff]
    %v87 = vld [vmem:[#allocation2 + $0xf8] sm:$0xff]
    %v88 = vld [vmem:[#allocation2 + $0x100] sm:$0xff]
    %v89 = vld [vmem:[#allocation2 + $0x108] sm:$0xff]
    %v90 = vld [vmem:[#allocation2 + $0x110] sm:$0xff]
    %v91 = vld [vmem:[#allocation2 + $0x118] sm:$0xff]
    %v92 = vld [vmem:[#allocation2 + $0x120] sm:$0xff]
    %v93 = vld [vmem:[#allocation2 + $0x128] sm:$0xff]
    %v94 = vld [vmem:[#allocation2 + $0x130] sm:$0xff]
    %v95 = vld [vmem:[#allocation2 + $0x138] sm:$0xff]
    %v96 = vld [vmem:[#allocation2 + $0x140] sm:$0xff]
    %v97 = vld [vmem:[#allocation2 + $0x148] sm:$0xff]
    %v98 = vld [vmem:[#allocation2 + $0x150] sm:$0xff]
    %v99 = vld [vmem:[#allocation2 + $0x158] sm:$0xff]
    %v100 = vld [vmem:[#allocation2 + $0x160] sm:$0xff]
    %v101 = vld [vmem:[#allocation2 + $0x168] sm:$0xff]
    %v102 = vld [vmem:[#allocation2 + $0x170] sm:$0xff]
    %v103 = vld [vmem:[#allocation2 + $0x178] sm:$0xff]
    %v104 = vld [vmem:[#allocation2 + $0x180] sm:$0xff]
    %v105 = vld [vmem:[#allocation2 + $0x188] sm:$0xff]
    %v106 = vld [vmem:[#allocation2 + $0x190] sm:$0xff]
    %v107 = vld [vmem:[#allocation2 + $0x198] sm:$0xff]
    %v108 = vld [vmem:[#allocation2 + $0x1a0] sm:$0xff]
    %v109 = vld [vmem:[#allocation2 + $0x1a8] sm:$0xff]
    %v110 = vld [vmem:[#allocation2 + $0x1b0] sm:$0xff]
    %v111 = vld [vmem:[#allocation2 + $0x1b8] sm:$0xff]
    %v112 = vld [vmem:[#allocation2 + $0x1c0] sm:$0xff]
    %v113 = vld [vmem:[#allocation2 + $0x1c8] sm:$0xff]
    %v114 = vld [vmem:[#allocation2 + $0x1d0] sm:$0xff]
    %v115 = vld [vmem:[#allocation2 + $0x1d8] sm:$0xff]
    %v116 = vld [vmem:[#allocation2 + $0x1e0] sm:$0xff]
    %v117 = vld [vmem:[#allocation2 + $0x1e8] sm:$0xff]
    %v118 = vld [vmem:[#allocation2 + $0x1f0] sm:$0xff]
    %v119 = vld [vmem:[#allocation2 + $0x1f8] sm:$0xff]
    %v120 = vld [vmem:[#allocation2 + $0x200] sm:$0xff]
    %v121 = vld [vmem:[#allocation2 + $0x208] sm:$0xff]
    %v122 = vld [vmem:[#allocation2 + $0x210] sm:$0xff]
    %v123 = vld [vmem:[#allocation2 + $0x218] sm:$0xff]
    %v124 = vld [vmem:[#allocation2 + $0x220] sm:$0xff]
    %v125 = vld [vmem:[#allocation2 + $0x228] sm:$0xff]
    %v126 = vld [vmem:[#allocation2 + $0x230] sm:$0xff]
    %v127 = vld [vmem:[#allocation2 + $0x238] sm:$0xff]
    %v128 = vld [vmem:[#allocation2 + $0x240] sm:$0xff]
    %v129 = vld [vmem:[#allocation2 + $0x248] sm:$0xff]
    %v130 = vld [vmem:[#allocation2 + $0x250] sm:$0xff]
    %v131 = vld [vmem:[#allocation2 + $0x258] sm:$0xff]
    %v132 = vld [vmem:[#allocation2 + $0x260] sm:$0xff]
    %v133 = vld [vmem:[#allocation2 + $0x268] sm:$0xff]
    %v134 = vld [vmem:[#allocation2 + $0x270] sm:$0xff]
    %v135 = vld [vmem:[#allocation2 + $0x278] sm:$0xff]
    %v136 = vld [vmem:[#allocation2 + $0x280] sm:$0xff]
    %v137 = vld [vmem:[#allocation2 + $0x288] sm:$0xff]
    %v138 = vld [vmem:[#allocation2 + $0x290] sm:$0xff]
    %v139 = vld [vmem:[#allocation2 + $0x298] sm:$0xff]
    %v140 = vld [vmem:[#allocation2 + $0x2a0] sm:$0xff]
    %v141 = vld [vmem:[#allocation2 + $0x2a8] sm:$0xff]
    %v142 = vld [vmem:[#allocation2 + $0x2b0] sm:$0xff]
    %v143 = vld [vmem:[#allocation2 + $0x2b8] sm:$0xff]
    %v144 = vld [vmem:[#allocation2 + $0x2c0] sm:$0xff]
    %v145 = vld [vmem:[#allocation2 + $0x2c8] sm:$0xff]
    %v146 = vld [vmem:[#allocation2 + $0x2d0] sm:$0xff]
    %v147 = vld [vmem:[#allocation2 + $0x2d8] sm:$0xff]
    %v148 = vld [vmem:[#allocation2 + $0x2e0] sm:$0xff]
    %v149 = vld [vmem:[#allocation2 + $0x2e8] sm:$0xff]
    %v150 = vld [vmem:[#allocation2 + $0x2f0] sm:$0xff]
    %v151 = vld [vmem:[#allocation2 + $0x2f8] sm:$0xff]
    %v152 = vld [vmem:[#allocation2 + $0x300] sm:$0xff]
    %v153 = vld [vmem:[#allocation2 + $0x308] sm:$0xff]
    %v154 = vld [vmem:[#allocation2 + $0x310] sm:$0xff]
    %v155 = vld [vmem:[#allocation2 + $0x318] sm:$0xff]
    %v156 = vld [vmem:[#allocation2 + $0x320] sm:$0xff]
    %v157 = vld [vmem:[#allocation2 + $0x328] sm:$0xff]
    %v158 = vld [vmem:[#allocation2 + $0x330] sm:$0xff]
    %v159 = vld [vmem:[#allocation2 + $0x338] sm:$0xff]
    %v160 = vld [vmem:[#allocation2 + $0x340] sm:$0xff]
    %v161 = vld [vmem:[#allocation2 + $0x348] sm:$0xff]
    %v162 = vld [vmem:[#allocation2 + $0x350] sm:$0xff]
    %v163 = vld [vmem:[#allocation2 + $0x358] sm:$0xff]
    %v164 = vld [vmem:[#allocation2 + $0x360] sm:$0xff]
    %v165 = vld [vmem:[#allocation2 + $0x368] sm:$0xff]
    %v166 = vld [vmem:[#allocation2 + $0x370] sm:$0xff]
    %v167 = vld [vmem:[#allocation2 + $0x378] sm:$0xff]
    %v168 = vld [vmem:[#allocation2 + $0x380] sm:$0xff]
    %v169 = vld [vmem:[#allocation2 + $0x388] sm:$0xff]
    %v170 = vld [vmem:[#allocation2 + $0x390] sm:$0xff]
    %v171 = vld [vmem:[#allocation2 + $0x398] sm:$0xff]
    %v172 = vld [vmem:[#allocation2 + $0x3a0] sm:$0xff]
    %v173 = vld [vmem:[#allocation2 + $0x3a8] sm:$0xff]
    %v174 = vld [vmem:[#allocation2 + $0x3b0] sm:$0xff]
    %v175 = vld [vmem:[#allocation2 + $0x3b8] sm:$0xff]
    %v176 = vld [vmem:[#allocation2 + $0x3c0] sm:$0xff]
    %v177 = vld [vmem:[#allocation2 + $0x3c8] sm:$0xff]
    %v178 = vld [vmem:[#allocation2 + $0x3d0] sm:$0xff]
    %v179 = vld [vmem:[#allocation2 + $0x3d8] sm:$0xff]
    %v180 = vld [vmem:[#allocation2 + $0x3e0] sm:$0xff]
    %v181 = vld [vmem:[#allocation2 + $0x3e8] sm:$0xff]
    %v182 = vld [vmem:[#allocation2 + $0x3f0] sm:$0xff]
    %v183 = vld [vmem:[#allocation2 + $0x3f8] sm:$0xff]
    %v184 = vmul.f32 %v56, %v52
    %v185 = vmul.f32 %v57, %v53
    %v186 = vmul.f32 %v58, %v54
    %v187 = vmul.f32 %v59, %v55
    %v188 = vmul.f32 %v60, %v52
    %v189 = vmul.f32 %v61, %v53
    %v190 = vmul.f32 %v62, %v54
    %v191 = vmul.f32 %v63, %v55
    %v192 = vmul.f32 %v64, %v52
    %v193 = vmul.f32 %v65, %v53
    %v194 = vmul.f32 %v66, %v54
    %v195 = vmul.f32 %v67, %v55
    %v196 = vmul.f32 %v68, %v52
    %v197 = vmul.f32 %v69, %v53
    %v198 = vmul.f32 %v70, %v54
    %v199 = vmul.f32 %v71, %v55
    %v200 = vmul.f32 %v72, %v52
    %v201 = vmul.f32 %v73, %v53
    %v202 = vmul.f32 %v74, %v54
    %v203 = vmul.f32 %v75, %v55
    %v204 = vmul.f32 %v76, %v52
    %v205 = vmul.f32 %v77, %v53
    %v206 = vmul.f32 %v78, %v54
    %v207 = vmul.f32 %v79, %v55
    %v208 = vmul.f32 %v80, %v52
    %v209 = vmul.f32 %v81, %v53
    %v210 = vmul.f32 %v82, %v54
    %v211 = vmul.f32 %v83, %v55
    %v212 = vmul.f32 %v84, %v52
    %v213 = vmul.f32 %v85, %v53
    %v214 = vmul.f32 %v86, %v54
    %v215 = vmul.f32 %v87, %v55
    %v216 = vmul.f32 %v88, %v52
    %v217 = vmul.f32 %v89, %v53
    %v218 = vmul.f32 %v90, %v54
    %v219 = vmul.f32 %v91, %v55
    %v220 = vmul.f32 %v92, %v52
    %v221 = vmul.f32 %v93, %v53
    %v222 = vmul.f32 %v94, %v54
    %v223 = vmul.f32 %v95, %v55
    %v224 = vmul.f32 %v96, %v52
    %v225 = vmul.f32 %v97, %v53
    %v226 = vmul.f32 %v98, %v54
    %v227 = vmul.f32 %v99, %v55
    %v228 = vmul.f32 %v100, %v52
    %v229 = vmul.f32 %v101, %v53
    %v230 = vmul.f32 %v102, %v54
    %v231 = vmul.f32 %v103, %v55
    %v232 = vmul.f32 %v104, %v52
    %v233 = vmul.f32 %v105, %v53
    %v234 = vmul.f32 %v106, %v54
    %v235 = vmul.f32 %v107, %v55
    %v236 = vmul.f32 %v108, %v52
    %v237 = vmul.f32 %v109, %v53
    %v238 = vmul.f32 %v110, %v54
    %v239 = vmul.f32 %v111, %v55
    %v240 = vmul.f32 %v112, %v52
    %v241 = vmul.f32 %v113, %v53
    %v242 = vmul.f32 %v114, %v54
    %v243 = vmul.f32 %v115, %v55
    %v244 = vmul.f32 %v116, %v52
    %v245 = vmul.f32 %v117, %v53
    %v246 = vmul.f32 %v118, %v54
    %v247 = vmul.f32 %v119, %v55
    %v248 = vmul.f32 %v120, %v52
    %v249 = vmul.f32 %v121, %v53
    %v250 = vmul.f32 %v122, %v54
    %v251 = vmul.f32 %v123, %v55
    %v252 = vmul.f32 %v124, %v52
    %v253 = vmul.f32 %v125, %v53
    %v254 = vmul.f32 %v126, %v54
    %v255 = vmul.f32 %v127, %v55
    %v256 = vmul.f32 %v128, %v52
    %v257 = vmul.f32 %v129, %v53
    %v258 = vmul.f32 %v130, %v54
    %v259 = vmul.f32 %v131, %v55
    %v260 = vmul.f32 %v132, %v52
    %v261 = vmul.f32 %v133, %v53
    %v262 = vmul.f32 %v134, %v54
    %v263 = vmul.f32 %v135, %v55
    %v264 = vmul.f32 %v136, %v52
    %v265 = vmul.f32 %v137, %v53
    %v266 = vmul.f32 %v138, %v54
    %v267 = vmul.f32 %v139, %v55
    %v268 = vmul.f32 %v140, %v52
    %v269 = vmul.f32 %v141, %v53
    %v270 = vmul.f32 %v142, %v54
    %v271 = vmul.f32 %v143, %v55
    %v272 = vmul.f32 %v144, %v52
    %v273 = vmul.f32 %v145, %v53
    %v274 = vmul.f32 %v146, %v54
    %v275 = vmul.f32 %v147, %v55
    %v276 = vmul.f32 %v148, %v52
    %v277 = vmul.f32 %v149, %v53
    %v278 = vmul.f32 %v150, %v54
    %v279 = vmul.f32 %v151, %v55
    %v280 = vmul.f32 %v152, %v52
    %v281 = vmul.f32 %v153, %v53
    %v282 = vmul.f32 %v154, %v54
    %v283 = vmul.f32 %v155, %v55
    %v284 = vmul.f32 %v156, %v52
    %v285 = vmul.f32 %v157, %v53
    %v286 = vmul.f32 %v158, %v54
    %v287 = vmul.f32 %v159, %v55
    %v288 = vmul.f32 %v160, %v52
    %v289 = vmul.f32 %v161, %v53
    %v290 = vmul.f32 %v162, %v54
    %v291 = vmul.f32 %v163, %v55
    %v292 = vmul.f32 %v164, %v52
    %v293 = vmul.f32 %v165, %v53
    %v294 = vmul.f32 %v166, %v54
    %v295 = vmul.f32 %v167, %v55
    %v296 = vmul.f32 %v168, %v52
    %v297 = vmul.f32 %v169, %v53
    %v298 = vmul.f32 %v170, %v54
    %v299 = vmul.f32 %v171, %v55
    %v300 = vmul.f32 %v172, %v52
    %v301 = vmul.f32 %v173, %v53
    %v302 = vmul.f32 %v174, %v54
    %v303 = vmul.f32 %v175, %v55
    %v304 = vmul.f32 %v176, %v52
    %v305 = vmul.f32 %v177, %v53
    %v306 = vmul.f32 %v178, %v54
    %v307 = vmul.f32 %v179, %v55
    %v308 = vmul.f32 %v180, %v52
    %v309 = vmul.f32 %v181, %v53
    %v310 = vmul.f32 %v182, %v54
    %v311 = vmul.f32 %v183, %v55
    %vm312 = vcmask 261120
    %v313 = vsel %vm312, %v184, 0.0
    %v314 = vsel %vm312, %v185, 0.0
    %v315 = vadd.f32 %v313, %v314
    %v316 = vsel %vm312, %v186, 0.0
    %v317 = vadd.f32 %v315, %v316
    %v318 = vsel %vm312, %v187, 0.0
    %v319 = vadd.f32 %v317, %v318
    %v320 = vrot.slane %v319, 4
    %v321 = vadd.f32 %v319, %v320
    %v322 = vrot.slane %v321, 2
    %v323 = vadd.f32 %v321, %v322
    %v324 = vrot.slane %v323, 1
    %v325 = vadd.f32 %v323, %v324
    %v326 = vsel %vm312, %v188, 0.0
    %v327 = vsel %vm312, %v189, 0.0
    %v328 = vadd.f32 %v326, %v327
    %v329 = vsel %vm312, %v190, 0.0
    %v330 = vadd.f32 %v328, %v329
    %v331 = vsel %vm312, %v191, 0.0
    %v332 = vadd.f32 %v330, %v331
    %v333 = vrot.slane %v332, 4
    %v334 = vadd.f32 %v332, %v333
    %v335 = vrot.slane %v334, 2
    %v336 = vadd.f32 %v334, %v335
    %v337 = vrot.slane %v336, 1
    %v338 = vadd.f32 %v336, %v337
    %v339 = vsel %vm312, %v192, 0.0
    %v340 = vsel %vm312, %v193, 0.0
    %v341 = vadd.f32 %v339, %v340
    %v342 = vsel %vm312, %v194, 0.0
    %v343 = vadd.f32 %v341, %v342
    %v344 = vsel %vm312, %v195, 0.0
    %v345 = vadd.f32 %v343, %v344
    %v346 = vrot.slane %v345, 4
    %v347 = vadd.f32 %v345, %v346
    %v348 = vrot.slane %v347, 2
    %v349 = vadd.f32 %v347, %v348
    %v350 = vrot.slane %v349, 1
    %v351 = vadd.f32 %v349, %v350
    %v352 = vsel %vm312, %v196, 0.0
    %v353 = vsel %vm312, %v197, 0.0
    %v354 = vadd.f32 %v352, %v353
    %v355 = vsel %vm312, %v198, 0.0
    %v356 = vadd.f32 %v354, %v355
    %v357 = vsel %vm312, %v199, 0.0
    %v358 = vadd.f32 %v356, %v357
    %v359 = vrot.slane %v358, 4
    %v360 = vadd.f32 %v358, %v359
    %v361 = vrot.slane %v360, 2
    %v362 = vadd.f32 %v360, %v361
    %v363 = vrot.slane %v362, 1
    %v364 = vadd.f32 %v362, %v363
    %v365 = vsel %vm312, %v200, 0.0
    %v366 = vsel %vm312, %v201, 0.0
    %v367 = vadd.f32 %v365, %v366
    %v368 = vsel %vm312, %v202, 0.0
    %v369 = vadd.f32 %v367, %v368
    %v370 = vsel %vm312, %v203, 0.0
    %v371 = vadd.f32 %v369, %v370
    %v372 = vrot.slane %v371, 4
    %v373 = vadd.f32 %v371, %v372
    %v374 = vrot.slane %v373, 2
    %v375 = vadd.f32 %v373, %v374
    %v376 = vrot.slane %v375, 1
    %v377 = vadd.f32 %v375, %v376
    %v378 = vsel %vm312, %v204, 0.0
    %v379 = vsel %vm312, %v205, 0.0
    %v380 = vadd.f32 %v378, %v379
    %v381 = vsel %vm312, %v206, 0.0
    %v382 = vadd.f32 %v380, %v381
    %v383 = vsel %vm312, %v207, 0.0
    %v384 = vadd.f32 %v382, %v383
    %v385 = vrot.slane %v384, 4
    %v386 = vadd.f32 %v384, %v385
    %v387 = vrot.slane %v386, 2
    %v388 = vadd.f32 %v386, %v387
    %v389 = vrot.slane %v388, 1
    %v390 = vadd.f32 %v388, %v389
    %v391 = vsel %vm312, %v208, 0.0
    %v392 = vsel %vm312, %v209, 0.0
    %v393 = vadd.f32 %v391, %v392
    %v394 = vsel %vm312, %v210, 0.0
    %v395 = vadd.f32 %v393, %v394
    %v396 = vsel %vm312, %v211, 0.0
    %v397 = vadd.f32 %v395, %v396
    %v398 = vrot.slane %v397, 4
    %v399 = vadd.f32 %v397, %v398
    %v400 = vrot.slane %v399, 2
    %v401 = vadd.f32 %v399, %v400
    %v402 = vrot.slane %v401, 1
    %v403 = vadd.f32 %v401, %v402
    %v404 = vsel %vm312, %v212, 0.0
    %v405 = vsel %vm312, %v213, 0.0
    %v406 = vadd.f32 %v404, %v405
    %v407 = vsel %vm312, %v214, 0.0
    %v408 = vadd.f32 %v406, %v407
    %v409 = vsel %vm312, %v215, 0.0
    %v410 = vadd.f32 %v408, %v409
    %v411 = vrot.slane %v410, 4
    %v412 = vadd.f32 %v410, %v411
    %v413 = vrot.slane %v412, 2
    %v414 = vadd.f32 %v412, %v413
    %v415 = vrot.slane %v414, 1
    %v416 = vadd.f32 %v414, %v415
    %v417 = vsel %vm312, %v216, 0.0
    %v418 = vsel %vm312, %v217, 0.0
    %v419 = vadd.f32 %v417, %v418
    %v420 = vsel %vm312, %v218, 0.0
    %v421 = vadd.f32 %v419, %v420
    %v422 = vsel %vm312, %v219, 0.0
    %v423 = vadd.f32 %v421, %v422
    %v424 = vrot.slane %v423, 4
    %v425 = vadd.f32 %v423, %v424
    %v426 = vrot.slane %v425, 2
    %v427 = vadd.f32 %v425, %v426
    %v428 = vrot.slane %v427, 1
    %v429 = vadd.f32 %v427, %v428
    %v430 = vsel %vm312, %v220, 0.0
    %v431 = vsel %vm312, %v221, 0.0
    %v432 = vadd.f32 %v430, %v431
    %v433 = vsel %vm312, %v222, 0.0
    %v434 = vadd.f32 %v432, %v433
    %v435 = vsel %vm312, %v223, 0.0
    %v436 = vadd.f32 %v434, %v435
    %v437 = vrot.slane %v436, 4
    %v438 = vadd.f32 %v436, %v437
    %v439 = vrot.slane %v438, 2
    %v440 = vadd.f32 %v438, %v439
    %v441 = vrot.slane %v440, 1
    %v442 = vadd.f32 %v440, %v441
    %v443 = vsel %vm312, %v224, 0.0
    %v444 = vsel %vm312, %v225, 0.0
    %v445 = vadd.f32 %v443, %v444
    %v446 = vsel %vm312, %v226, 0.0
    %v447 = vadd.f32 %v445, %v446
    %v448 = vsel %vm312, %v227, 0.0
    %v449 = vadd.f32 %v447, %v448
    %v450 = vrot.slane %v449, 4
    %v451 = vadd.f32 %v449, %v450
    %v452 = vrot.slane %v451, 2
    %v453 = vadd.f32 %v451, %v452
    %v454 = vrot.slane %v453, 1
    %v455 = vadd.f32 %v453, %v454
    %v456 = vsel %vm312, %v228, 0.0
    %v457 = vsel %vm312, %v229, 0.0
    %v458 = vadd.f32 %v456, %v457
    %v459 = vsel %vm312, %v230, 0.0
    %v460 = vadd.f32 %v458, %v459
    %v461 = vsel %vm312, %v231, 0.0
    %v462 = vadd.f32 %v460, %v461
    %v463 = vrot.slane %v462, 4
    %v464 = vadd.f32 %v462, %v463
    %v465 = vrot.slane %v464, 2
    %v466 = vadd.f32 %v464, %v465
    %v467 = vrot.slane %v466, 1
    %v468 = vadd.f32 %v466, %v467
    %v469 = vsel %vm312, %v232, 0.0
    %v470 = vsel %vm312, %v233, 0.0
    %v471 = vadd.f32 %v469, %v470
    %v472 = vsel %vm312, %v234, 0.0
    %v473 = vadd.f32 %v471, %v472
    %v474 = vsel %vm312, %v235, 0.0
    %v475 = vadd.f32 %v473, %v474
    %v476 = vrot.slane %v475, 4
    %v477 = vadd.f32 %v475, %v476
    %v478 = vrot.slane %v477, 2
    %v479 = vadd.f32 %v477, %v478
    %v480 = vrot.slane %v479, 1
    %v481 = vadd.f32 %v479, %v480
    %v482 = vsel %vm312, %v236, 0.0
    %v483 = vsel %vm312, %v237, 0.0
    %v484 = vadd.f32 %v482, %v483
    %v485 = vsel %vm312, %v238, 0.0
    %v486 = vadd.f32 %v484, %v485
    %v487 = vsel %vm312, %v239, 0.0
    %v488 = vadd.f32 %v486, %v487
    %v489 = vrot.slane %v488, 4
    %v490 = vadd.f32 %v488, %v489
    %v491 = vrot.slane %v490, 2
    %v492 = vadd.f32 %v490, %v491
    %v493 = vrot.slane %v492, 1
    %v494 = vadd.f32 %v492, %v493
    %v495 = vsel %vm312, %v240, 0.0
    %v496 = vsel %vm312, %v241, 0.0
    %v497 = vadd.f32 %v495, %v496
    %v498 = vsel %vm312, %v242, 0.0
    %v499 = vadd.f32 %v497, %v498
    %v500 = vsel %vm312, %v243, 0.0
    %v501 = vadd.f32 %v499, %v500
    %v502 = vrot.slane %v501, 4
    %v503 = vadd.f32 %v501, %v502
    %v504 = vrot.slane %v503, 2
    %v505 = vadd.f32 %v503, %v504
    %v506 = vrot.slane %v505, 1
    %v507 = vadd.f32 %v505, %v506
    %v508 = vsel %vm312, %v244, 0.0
    %v509 = vsel %vm312, %v245, 0.0
    %v510 = vadd.f32 %v508, %v509
    %v511 = vsel %vm312, %v246, 0.0
    %v512 = vadd.f32 %v510, %v511
    %v513 = vsel %vm312, %v247, 0.0
    %v514 = vadd.f32 %v512, %v513
    %v515 = vrot.slane %v514, 4
    %v516 = vadd.f32 %v514, %v515
    %v517 = vrot.slane %v516, 2
    %v518 = vadd.f32 %v516, %v517
    %v519 = vrot.slane %v518, 1
    %v520 = vadd.f32 %v518, %v519
    %v521 = vsel %vm312, %v248, 0.0
    %v522 = vsel %vm312, %v249, 0.0
    %v523 = vadd.f32 %v521, %v522
    %v524 = vsel %vm312, %v250, 0.0
    %v525 = vadd.f32 %v523, %v524
    %v526 = vsel %vm312, %v251, 0.0
    %v527 = vadd.f32 %v525, %v526
    %v528 = vrot.slane %v527, 4
    %v529 = vadd.f32 %v527, %v528
    %v530 = vrot.slane %v529, 2
    %v531 = vadd.f32 %v529, %v530
    %v532 = vrot.slane %v531, 1
    %v533 = vadd.f32 %v531, %v532
    %v534 = vsel %vm312, %v252, 0.0
    %v535 = vsel %vm312, %v253, 0.0
    %v536 = vadd.f32 %v534, %v535
    %v537 = vsel %vm312, %v254, 0.0
    %v538 = vadd.f32 %v536, %v537
    %v539 = vsel %vm312, %v255, 0.0
    %v540 = vadd.f32 %v538, %v539
    %v541 = vrot.slane %v540, 4
    %v542 = vadd.f32 %v540, %v541
    %v543 = vrot.slane %v542, 2
    %v544 = vadd.f32 %v542, %v543
    %v545 = vrot.slane %v544, 1
    %v546 = vadd.f32 %v544, %v545
    %v547 = vsel %vm312, %v256, 0.0
    %v548 = vsel %vm312, %v257, 0.0
    %v549 = vadd.f32 %v547, %v548
    %v550 = vsel %vm312, %v258, 0.0
    %v551 = vadd.f32 %v549, %v550
    %v552 = vsel %vm312, %v259, 0.0
    %v553 = vadd.f32 %v551, %v552
    %v554 = vrot.slane %v553, 4
    %v555 = vadd.f32 %v553, %v554
    %v556 = vrot.slane %v555, 2
    %v557 = vadd.f32 %v555, %v556
    %v558 = vrot.slane %v557, 1
    %v559 = vadd.f32 %v557, %v558
    %v560 = vsel %vm312, %v260, 0.0
    %v561 = vsel %vm312, %v261, 0.0
    %v562 = vadd.f32 %v560, %v561
    %v563 = vsel %vm312, %v262, 0.0
    %v564 = vadd.f32 %v562, %v563
    %v565 = vsel %vm312, %v263, 0.0
    %v566 = vadd.f32 %v564, %v565
    %v567 = vrot.slane %v566, 4
    %v568 = vadd.f32 %v566, %v567
    %v569 = vrot.slane %v568, 2
    %v570 = vadd.f32 %v568, %v569
    %v571 = vrot.slane %v570, 1
    %v572 = vadd.f32 %v570, %v571
    %v573 = vsel %vm312, %v264, 0.0
    %v574 = vsel %vm312, %v265, 0.0
    %v575 = vadd.f32 %v573, %v574
    %v576 = vsel %vm312, %v266, 0.0
    %v577 = vadd.f32 %v575, %v576
    %v578 = vsel %vm312, %v267, 0.0
    %v579 = vadd.f32 %v577, %v578
    %v580 = vrot.slane %v579, 4
    %v581 = vadd.f32 %v579, %v580
    %v582 = vrot.slane %v581, 2
    %v583 = vadd.f32 %v581, %v582
    %v584 = vrot.slane %v583, 1
    %v585 = vadd.f32 %v583, %v584
    %v586 = vsel %vm312, %v268, 0.0
    %v587 = vsel %vm312, %v269, 0.0
    %v588 = vadd.f32 %v586, %v587
    %v589 = vsel %vm312, %v270, 0.0
    %v590 = vadd.f32 %v588, %v589
    %v591 = vsel %vm312, %v271, 0.0
    %v592 = vadd.f32 %v590, %v591
    %v593 = vrot.slane %v592, 4
    %v594 = vadd.f32 %v592, %v593
    %v595 = vrot.slane %v594, 2
    %v596 = vadd.f32 %v594, %v595
    %v597 = vrot.slane %v596, 1
    %v598 = vadd.f32 %v596, %v597
    %v599 = vsel %vm312, %v272, 0.0
    %v600 = vsel %vm312, %v273, 0.0
    %v601 = vadd.f32 %v599, %v600
    %v602 = vsel %vm312, %v274, 0.0
    %v603 = vadd.f32 %v601, %v602
    %v604 = vsel %vm312, %v275, 0.0
    %v605 = vadd.f32 %v603, %v604
    %v606 = vrot.slane %v605, 4
    %v607 = vadd.f32 %v605, %v606
    %v608 = vrot.slane %v607, 2
    %v609 = vadd.f32 %v607, %v608
    %v610 = vrot.slane %v609, 1
    %v611 = vadd.f32 %v609, %v610
    %v612 = vsel %vm312, %v276, 0.0
    %v613 = vsel %vm312, %v277, 0.0
    %v614 = vadd.f32 %v612, %v613
    %v615 = vsel %vm312, %v278, 0.0
    %v616 = vadd.f32 %v614, %v615
    %v617 = vsel %vm312, %v279, 0.0
    %v618 = vadd.f32 %v616, %v617
    %v619 = vrot.slane %v618, 4
    %v620 = vadd.f32 %v618, %v619
    %v621 = vrot.slane %v620, 2
    %v622 = vadd.f32 %v620, %v621
    %v623 = vrot.slane %v622, 1
    %v624 = vadd.f32 %v622, %v623
    %v625 = vsel %vm312, %v280, 0.0
    %v626 = vsel %vm312, %v281, 0.0
    %v627 = vadd.f32 %v625, %v626
    %v628 = vsel %vm312, %v282, 0.0
    %v629 = vadd.f32 %v627, %v628
    %v630 = vsel %vm312, %v283, 0.0
    %v631 = vadd.f32 %v629, %v630
    %v632 = vrot.slane %v631, 4
    %v633 = vadd.f32 %v631, %v632
    %v634 = vrot.slane %v633, 2
    %v635 = vadd.f32 %v633, %v634
    %v636 = vrot.slane %v635, 1
    %v637 = vadd.f32 %v635, %v636
    %v638 = vsel %vm312, %v284, 0.0
    %v639 = vsel %vm312, %v285, 0.0
    %v640 = vadd.f32 %v638, %v639
    %v641 = vsel %vm312, %v286, 0.0
    %v642 = vadd.f32 %v640, %v641
    %v643 = vsel %vm312, %v287, 0.0
    %v644 = vadd.f32 %v642, %v643
    %v645 = vrot.slane %v644, 4
    %v646 = vadd.f32 %v644, %v645
    %v647 = vrot.slane %v646, 2
    %v648 = vadd.f32 %v646, %v647
    %v649 = vrot.slane %v648, 1
    %v650 = vadd.f32 %v648, %v649
    %v651 = vsel %vm312, %v288, 0.0
    %v652 = vsel %vm312, %v289, 0.0
    %v653 = vadd.f32 %v651, %v652
    %v654 = vsel %vm312, %v290, 0.0
    %v655 = vadd.f32 %v653, %v654
    %v656 = vsel %vm312, %v291, 0.0
    %v657 = vadd.f32 %v655, %v656
    %v658 = vrot.slane %v657, 4
    %v659 = vadd.f32 %v657, %v658
    %v660 = vrot.slane %v659, 2
    %v661 = vadd.f32 %v659, %v660
    %v662 = vrot.slane %v661, 1
    %v663 = vadd.f32 %v661, %v662
    %v664 = vsel %vm312, %v292, 0.0
    %v665 = vsel %vm312, %v293, 0.0
    %v666 = vadd.f32 %v664, %v665
    %v667 = vsel %vm312, %v294, 0.0
    %v668 = vadd.f32 %v666, %v667
    %v669 = vsel %vm312, %v295, 0.0
    %v670 = vadd.f32 %v668, %v669
    %v671 = vrot.slane %v670, 4
    %v672 = vadd.f32 %v670, %v671
    %v673 = vrot.slane %v672, 2
    %v674 = vadd.f32 %v672, %v673
    %v675 = vrot.slane %v674, 1
    %v676 = vadd.f32 %v674, %v675
    %v677 = vsel %vm312, %v296, 0.0
    %v678 = vsel %vm312, %v297, 0.0
    %v679 = vadd.f32 %v677, %v678
    %v680 = vsel %vm312, %v298, 0.0
    %v681 = vadd.f32 %v679, %v680
    %v682 = vsel %vm312, %v299, 0.0
    %v683 = vadd.f32 %v681, %v682
    %v684 = vrot.slane %v683, 4
    %v685 = vadd.f32 %v683, %v684
    %v686 = vrot.slane %v685, 2
    %v687 = vadd.f32 %v685, %v686
    %v688 = vrot.slane %v687, 1
    %v689 = vadd.f32 %v687, %v688
    %v690 = vsel %vm312, %v300, 0.0
    %v691 = vsel %vm312, %v301, 0.0
    %v692 = vadd.f32 %v690, %v691
    %v693 = vsel %vm312, %v302, 0.0
    %v694 = vadd.f32 %v692, %v693
    %v695 = vsel %vm312, %v303, 0.0
    %v696 = vadd.f32 %v694, %v695
    %v697 = vrot.slane %v696, 4
    %v698 = vadd.f32 %v696, %v697
    %v699 = vrot.slane %v698, 2
    %v700 = vadd.f32 %v698, %v699
    %v701 = vrot.slane %v700, 1
    %v702 = vadd.f32 %v700, %v701
    %v703 = vsel %vm312, %v304, 0.0
    %v704 = vsel %vm312, %v305, 0.0
    %v705 = vadd.f32 %v703, %v704
    %v706 = vsel %vm312, %v306, 0.0
    %v707 = vadd.f32 %v705, %v706
    %v708 = vsel %vm312, %v307, 0.0
    %v709 = vadd.f32 %v707, %v708
    %v710 = vrot.slane %v709, 4
    %v711 = vadd.f32 %v709, %v710
    %v712 = vrot.slane %v711, 2
    %v713 = vadd.f32 %v711, %v712
    %v714 = vrot.slane %v713, 1
    %v715 = vadd.f32 %v713, %v714
    %v716 = vsel %vm312, %v308, 0.0
    %v717 = vsel %vm312, %v309, 0.0
    %v718 = vadd.f32 %v716, %v717
    %v719 = vsel %vm312, %v310, 0.0
    %v720 = vadd.f32 %v718, %v719
    %v721 = vsel %vm312, %v311, 0.0
    %v722 = vadd.f32 %v720, %v721
    %v723 = vrot.slane %v722, 4
    %v724 = vadd.f32 %v722, %v723
    %v725 = vrot.slane %v724, 2
    %v726 = vadd.f32 %v724, %v725
    %v727 = vrot.slane %v726, 1
    %v728 = vadd.f32 %v726, %v727
    %v729 = vld [vmem:[%s3] sm:$0x1]
    %v731 = vperm.slane %v729, 0
    %v733 = vmul.f32 %v52, %v731
    %v734 = vmul.f32 %v53, %v731
    %v735 = vmul.f32 %v54, %v731
    %v736 = vmul.f32 %v55, %v731
    %vm769 = vcmask 1041409
    %v770 = vsel %vm769, %v338, %v325
    %vm771 = vcmask 1042434
    %v772 = vsel %vm771, %v351, %v770
    %vm773 = vcmask 1043459
    %v774 = vsel %vm773, %v364, %v772
    %vm775 = vcmask 1044484
    %v776 = vsel %vm775, %v377, %v774
    %vm777 = vcmask 1045509
    %v778 = vsel %vm777, %v390, %v776
    %vm779 = vcmask 1046534
    %v780 = vsel %vm779, %v403, %v778
    %vm781 = vcmask 1047559
    %v782 = vsel %vm781, %v416, %v780
    %v783 = vsel %vm769, %v442, %v429
    %v784 = vsel %vm771, %v455, %v783
    %v785 = vsel %vm773, %v468, %v784
    %v786 = vsel %vm775, %v481, %v785
    %v787 = vsel %vm777, %v494, %v786
    %v788 = vsel %vm779, %v507, %v787
    %v789 = vsel %vm781, %v520, %v788
    %v790 = vsel %vm769, %v546, %v533
    %v791 = vsel %vm771, %v559, %v790
    %v792 = vsel %vm773, %v572, %v791
    %v793 = vsel %vm775, %v585, %v792
    %v794 = vsel %vm777, %v598, %v793
    %v795 = vsel %vm779, %v611, %v794
    %v796 = vsel %vm781, %v624, %v795
    %v797 = vsel %vm769, %v650, %v637
    %v798 = vsel %vm771, %v663, %v797
    %v799 = vsel %vm773, %v676, %v798
    %v800 = vsel %vm775, %v689, %v799
    %v801 = vsel %vm777, %v702, %v800
    %v802 = vsel %vm779, %v715, %v801
    %v803 = vsel %vm781, %v728, %v802
    %v808 = vadd.f32 %v733, %v782
    %v809 = vadd.f32 %v734, %v789
    %v810 = vadd.f32 %v735, %v796
    %v811 = vadd.f32 %v736, %v803
    %v812 = vmul.f32 %v808, %v808
    %v813 = vmul.f32 %v809, %v809
    %v814 = vmul.f32 %v810, %v810
    %v815 = vmul.f32 %v811, %v811
    %v816 = vmul.f32 %v808, %v812
    %v817 = vmul.f32 %v809, %v813
    %v818 = vmul.f32 %v810, %v814
    %v819 = vmul.f32 %v811, %v815
    %v820 = vmul.f32 %v816, 0.044715
    %v821 = vmul.f32 %v817, 0.044715
    %v822 = vmul.f32 %v818, 0.044715
    %v823 = vmul.f32 %v819, 0.044715
    %v824 = vadd.f32 %v808, %v820
    %v825 = vadd.f32 %v809, %v821
    %v826 = vadd.f32 %v810, %v822
    %v827 = vadd.f32 %v811, %v823
    %v828 = vmul.f32 %v824, 0.7978846
    %v829 = vmul.f32 %v825, 0.7978846
    %v830 = vmul.f32 %v826, 0.7978846
    %v831 = vmul.f32 %v827, 0.7978846
    %v832 = vtanh.pop %v828
    %v833 = vtanh.pop %v829
    %v834 = vtanh.pop %v830
    %v835 = vtanh.pop %v831
    %v836 = vadd.f32 %v832, 1.0
    %v837 = vadd.f32 %v833, 1.0
    %v838 = vadd.f32 %v834, 1.0
    %v839 = vadd.f32 %v835, 1.0
    %v840 = vmul.f32 %v836, 0.5
    %v841 = vmul.f32 %v837, 0.5
    %v842 = vmul.f32 %v838, 0.5
    %v843 = vmul.f32 %v839, 0.5
    %v844 = vmul.f32 %v808, %v840
    %v845 = vmul.f32 %v809, %v841
    %v846 = vmul.f32 %v810, %v842
    %v847 = vmul.f32 %v811, %v843
    %v848 = vld [vmem:[%s4] sm:$0xff]
    %v849 = vld [vmem:[%s4 + $0x8] sm:$0xff]
    %v850 = vld [vmem:[%s4 + $0x10] sm:$0xff]
    %v851 = vld [vmem:[%s4 + $0x18] sm:$0xff]
    %v852 = vld [vmem:[%s5] sm:$0x1]
    %v854 = vperm.slane %v852, 0
    %v857 = vsel %vm312, %v844, 0
    %v860 = vsel %vm312, %v845, 0
    %v863 = vsel %vm312, %v846, 0
    %v866 = vsel %vm312, %v847, 0
    %868 = vmatpush.msra.mxu0 0.0
    %869 = vmatpush.msra.mxu0 0.0
    %870 = vmatpush.msra.mxu0 0.0
    %871 = vmatpush.msra.mxu0 0.0
    %872 = vmatpush.msra.mxu0 0.0
    %873 = vmatpush.msra.mxu0 0.0
    %874 = vmatpush.msra.mxu0 0.0
    %875 = vmatpush.msra.mxu0 0.0
    %876 = vmatpush.msra.mxu0 0.0
    %877 = vmatpush.msra.mxu0 0.0
    %878 = vmatpush.msra.mxu0 0.0
    %879 = vmatpush.msra.mxu0 0.0
    %880 = vmatpush.msra.mxu0 %v851
    %881 = vmatpush.msra.mxu0 %v850
    %882 = vmatpush.msra.mxu0 %v849
    %883 = vmatpush.msra.mxu0 %v848
    %884 = vmatmul.f32.gmra.mxu0 %v857
    %v885 = vpop.f32.mrf.mxu0
    %v886 = vadd.f32 %v854, %v885
    %887 = vmatmul.f32.gmra.mxu0 %v860
    %v888 = vpop.f32.mrf.mxu0
    %v889 = vadd.f32 %v854, %v888
    %890 = vmatmul.f32.gmra.mxu0 %v863
    %v891 = vpop.f32.mrf.mxu0
    %v892 = vadd.f32 %v854, %v891
    %893 = vmatmul.f32.gmra.mxu0 %v866
    %v894 = vpop.f32.mrf.mxu0
    %v895 = vadd.f32 %v854, %v894
    %896 = vdwg.mxu0
    %v897 = vadd.f32 %v886, %v52
    %v898 = vadd.f32 %v889, %v53
    %v899 = vadd.f32 %v892, %v54
    %v900 = vadd.f32 %v895, %v55
    %v901 = vsel %vm312, %v897, 0.0
    %902 = vadd.xlane.f32.xlu0 %v901
    %v903 = vpop.xlane.xlu0 %902
    %v904 = vsel %vm312, %v898, 0.0
    %905 = vadd.xlane.f32.xlu0 %v904
    %v906 = vpop.xlane.xlu0 %905
    %v907 = vsel %vm312, %v899, 0.0
    %908 = vadd.xlane.f32.xlu0 %v907
    %v909 = vpop.xlane.xlu0 %908
    %v910 = vsel %vm312, %v900, 0.0
    %911 = vadd.xlane.f32.xlu0 %v910
    %v912 = vpop.xlane.xlu0 %911
    %v913 = vrcp.pop 32.0
    %v914 = vmul.f32 32.0, %v913
    %v915 = vsub.f32 1.0, %v914
    %v916 = vmul.f32 %v913, %v915
    %v917 = vadd.f32 %v913, %v916
    %vm918 = vweird.f32 %v913
    %v919 = vsel %vm918, %v913, %v917
    %v920 = vmul.f32 %v903, %v919
    %v921 = vmul.f32 %v906, %v919
    %v922 = vmul.f32 %v909, %v919
    %v923 = vmul.f32 %v912, %v919
    %v924 = vsub.f32 %v897, %v920
    %v925 = vsub.f32 %v898, %v921
    %v926 = vsub.f32 %v899, %v922
    %v927 = vsub.f32 %v900, %v923
    %v928 = vmul.f32 %v924, %v924
    %v929 = vmul.f32 %v925, %v925
    %v930 = vmul.f32 %v926, %v926
    %v931 = vmul.f32 %v927, %v927
    %v932 = vsel %vm312, %v928, 0.0
    %933 = vadd.xlane.f32.xlu0 %v932
    %v934 = vpop.xlane.xlu0 %933
    %v935 = vsel %vm312, %v929, 0.0
    %936 = vadd.xlane.f32.xlu0 %v935
    %v937 = vpop.xlane.xlu0 %936
    %v938 = vsel %vm312, %v930, 0.0
    %939 = vadd.xlane.f32.xlu0 %v938
    %v940 = vpop.xlane.xlu0 %939
    %v941 = vsel %vm312, %v931, 0.0
    %942 = vadd.xlane.f32.xlu0 %v941
    %v943 = vpop.xlane.xlu0 %942
    %v944 = vmul.f32 %v934, %v919
    %v945 = vmul.f32 %v937, %v919
    %v946 = vmul.f32 %v940, %v919
    %v947 = vmul.f32 %v943, %v919
    %v948 = vadd.f32 %v944, 1e-05
    %v949 = vadd.f32 %v945, 1e-05
    %v950 = vadd.f32 %v946, 1e-05
    %v951 = vadd.f32 %v947, 1e-05
    %v952 = vrsqrt.pop %v948
    %v953 = vmul.f32 %v952, %v948
    %v954 = vmul.f32 %v953, %v952
    %v955 = vmul.f32 0.5, %v954
    %v956 = vsub.f32 1.5, %v955
    %v957 = vmul.f32 %v952, %v956
    %vm958 = vweird.f32 %v948
    %vm959 = vweird.f32 %v952
    %vm960 = vmor %vm958, %vm959
    %v961 = vsel %vm960, %v952, %v957
    %v962 = vrsqrt.pop %v949
    %v963 = vmul.f32 %v962, %v949
    %v964 = vmul.f32 %v963, %v962
    %v965 = vmul.f32 0.5, %v964
    %v966 = vsub.f32 1.5, %v965
    %v967 = vmul.f32 %v962, %v966
    %vm968 = vweird.f32 %v949
    %vm969 = vweird.f32 %v962
    %vm970 = vmor %vm968, %vm969
    %v971 = vsel %vm970, %v962, %v967
    %v972 = vrsqrt.pop %v950
    %v973 = vmul.f32 %v972, %v950
    %v974 = vmul.f32 %v973, %v972
    %v975 = vmul.f32 0.5, %v974
    %v976 = vsub.f32 1.5, %v975
    %v977 = vmul.f32 %v972, %v976
    %vm978 = vweird.f32 %v950
    %vm979 = vweird.f32 %v972
    %vm980 = vmor %vm978, %vm979
    %v981 = vsel %vm980, %v972, %v977
    %v982 = vrsqrt.pop %v951
    %v983 = vmul.f32 %v982, %v951
    %v984 = vmul.f32 %v983, %v982
    %v985 = vmul.f32 0.5, %v984
    %v986 = vsub.f32 1.5, %v985
    %v987 = vmul.f32 %v982, %v986
    %vm988 = vweird.f32 %v951
    %vm989 = vweird.f32 %v982
    %vm990 = vmor %vm988, %vm989
    %v991 = vsel %vm990, %v982, %v987
    %v992 = vmul.f32 %v924, %v961
    %v993 = vmul.f32 %v925, %v971
    %v994 = vmul.f32 %v926, %v981
    %v995 = vmul.f32 %v927, %v991
    %v996 = vld [vmem:[%s6] sm:$0x1]
    %v998 = vperm.slane %v996, 0
    %v1000 = vmul.f32 %v992, %v998
    %v1001 = vmul.f32 %v993, %v998
    %v1002 = vmul.f32 %v994, %v998
    %v1003 = vmul.f32 %v995, %v998
    %v1004 = vld [vmem:[%s7] sm:$0x1]
    %v1006 = vperm.slane %v1004, 0
    %v1008 = vadd.f32 %v1000, %v1006
    %v1009 = vadd.f32 %v1001, %v1006
    %v1010 = vadd.f32 %v1002, %v1006
    %v1011 = vadd.f32 %v1003, %v1006
    %s1012 = scalar_lea.vmem [#allocation2], 1024
    %v1013 = vld [vmem:[%s1012] sm:$0xff]
    %v1014 = vld [vmem:[%s1012 + $0x8] sm:$0xff]
    %v1015 = vld [vmem:[%s1012 + $0x10] sm:$0xff]
    %v1016 = vld [vmem:[%s1012 + $0x18] sm:$0xff]
    %v1017 = vld [vmem:[%s1012 + $0x20] sm:$0xff]
    %v1018 = vld [vmem:[%s1012 + $0x28] sm:$0xff]
    %v1019 = vld [vmem:[%s1012 + $0x30] sm:$0xff]
    %v1020 = vld [vmem:[%s1012 + $0x38] sm:$0xff]
    %v1021 = vld [vmem:[%s1012 + $0x40] sm:$0xff]
    %v1022 = vld [vmem:[%s1012 + $0x48] sm:$0xff]
    %v1023 = vld [vmem:[%s1012 + $0x50] sm:$0xff]
    %v1024 = vld [vmem:[%s1012 + $0x58] sm:$0xff]
    %v1025 = vld [vmem:[%s1012 + $0x60] sm:$0xff]
    %v1026 = vld [vmem:[%s1012 + $0x68] sm:$0xff]
    %v1027 = vld [vmem:[%s1012 + $0x70] sm:$0xff]
    %v1028 = vld [vmem:[%s1012 + $0x78] sm:$0xff]
    %v1029 = vld [vmem:[%s1012 + $0x80] sm:$0xff]
    %v1030 = vld [vmem:[%s1012 + $0x88] sm:$0xff]
    %v1031 = vld [vmem:[%s1012 + $0x90] sm:$0xff]
    %v1032 = vld [vmem:[%s1012 + $0x98] sm:$0xff]
    %v1033 = vld [vmem:[%s1012 + $0xa0] sm:$0xff]
    %v1034 = vld [vmem:[%s1012 + $0xa8] sm:$0xff]
    %v1035 = vld [vmem:[%s1012 + $0xb0] sm:$0xff]
    %v1036 = vld [vmem:[%s1012 + $0xb8] sm:$0xff]
    %v1037 = vld [vmem:[%s1012 + $0xc0] sm:$0xff]
    %v1038 = vld [vmem:[%s1012 + $0xc8] sm:$0xff]
    %v1039 = vld [vmem:[%s1012 + $0xd0] sm:$0xff]
    %v1040 = vld [vmem:[%s1012 + $0xd8] sm:$0xff]
    %v1041 = vld [vmem:[%s1012 + $0xe0] sm:$0xff]
    %v1042 = vld [vmem:[%s1012 + $0xe8] sm:$0xff]
    %v1043 = vld [vmem:[%s1012 + $0xf0] sm:$0xff]
    %v1044 = vld [vmem:[%s1012 + $0xf8] sm:$0xff]
    %v1045 = vld [vmem:[%s1012 + $0x100] sm:$0xff]
    %v1046 = vld [vmem:[%s1012 + $0x108] sm:$0xff]
    %v1047 = vld [vmem:[%s1012 + $0x110] sm:$0xff]
    %v1048 = vld [vmem:[%s1012 + $0x118] sm:$0xff]
    %v1049 = vld [vmem:[%s1012 + $0x120] sm:$0xff]
    %v1050 = vld [vmem:[%s1012 + $0x128] sm:$0xff]
    %v1051 = vld [vmem:[%s1012 + $0x130] sm:$0xff]
    %v1052 = vld [vmem:[%s1012 + $0x138] sm:$0xff]
    %v1053 = vld [vmem:[%s1012 + $0x140] sm:$0xff]
    %v1054 = vld [vmem:[%s1012 + $0x148] sm:$0xff]
    %v1055 = vld [vmem:[%s1012 + $0x150] sm:$0xff]
    %v1056 = vld [vmem:[%s1012 + $0x158] sm:$0xff]
    %v1057 = vld [vmem:[%s1012 + $0x160] sm:$0xff]
    %v1058 = vld [vmem:[%s1012 + $0x168] sm:$0xff]
    %v1059 = vld [vmem:[%s1012 + $0x170] sm:$0xff]
    %v1060 = vld [vmem:[%s1012 + $0x178] sm:$0xff]
    %v1061 = vld [vmem:[%s1012 + $0x180] sm:$0xff]
    %v1062 = vld [vmem:[%s1012 + $0x188] sm:$0xff]
    %v1063 = vld [vmem:[%s1012 + $0x190] sm:$0xff]
    %v1064 = vld [vmem:[%s1012 + $0x198] sm:$0xff]
    %v1065 = vld [vmem:[%s1012 + $0x1a0] sm:$0xff]
    %v1066 = vld [vmem:[%s1012 + $0x1a8] sm:$0xff]
    %v1067 = vld [vmem:[%s1012 + $0x1b0] sm:$0xff]
    %v1068 = vld [vmem:[%s1012 + $0x1b8] sm:$0xff]
    %v1069 = vld [vmem:[%s1012 + $0x1c0] sm:$0xff]
    %v1070 = vld [vmem:[%s1012 + $0x1c8] sm:$0xff]
    %v1071 = vld [vmem:[%s1012 + $0x1d0] sm:$0xff]
    %v1072 = vld [vmem:[%s1012 + $0x1d8] sm:$0xff]
    %v1073 = vld [vmem:[%s1012 + $0x1e0] sm:$0xff]
    %v1074 = vld [vmem:[%s1012 + $0x1e8] sm:$0xff]
    %v1075 = vld [vmem:[%s1012 + $0x1f0] sm:$0xff]
    %v1076 = vld [vmem:[%s1012 + $0x1f8] sm:$0xff]
    %v1077 = vld [vmem:[%s1012 + $0x200] sm:$0xff]
    %v1078 = vld [vmem:[%s1012 + $0x208] sm:$0xff]
    %v1079 = vld [vmem:[%s1012 + $0x210] sm:$0xff]
    %v1080 = vld [vmem:[%s1012 + $0x218] sm:$0xff]
    %v1081 = vld [vmem:[%s1012 + $0x220] sm:$0xff]
    %v1082 = vld [vmem:[%s1012 + $0x228] sm:$0xff]
    %v1083 = vld [vmem:[%s1012 + $0x230] sm:$0xff]
    %v1084 = vld [vmem:[%s1012 + $0x238] sm:$0xff]
    %v1085 = vld [vmem:[%s1012 + $0x240] sm:$0xff]
    %v1086 = vld [vmem:[%s1012 + $0x248] sm:$0xff]
    %v1087 = vld [vmem:[%s1012 + $0x250] sm:$0xff]
    %v1088 = vld [vmem:[%s1012 + $0x258] sm:$0xff]
    %v1089 = vld [vmem:[%s1012 + $0x260] sm:$0xff]
    %v1090 = vld [vmem:[%s1012 + $0x268] sm:$0xff]
    %v1091 = vld [vmem:[%s1012 + $0x270] sm:$0xff]
    %v1092 = vld [vmem:[%s1012 + $0x278] sm:$0xff]
    %v1093 = vld [vmem:[%s1012 + $0x280] sm:$0xff]
    %v1094 = vld [vmem:[%s1012 + $0x288] sm:$0xff]
    %v1095 = vld [vmem:[%s1012 + $0x290] sm:$0xff]
    %v1096 = vld [vmem:[%s1012 + $0x298] sm:$0xff]
    %v1097 = vld [vmem:[%s1012 + $0x2a0] sm:$0xff]
    %v1098 = vld [vmem:[%s1012 + $0x2a8] sm:$0xff]
    %v1099 = vld [vmem:[%s1012 + $0x2b0] sm:$0xff]
    %v1100 = vld [vmem:[%s1012 + $0x2b8] sm:$0xff]
    %v1101 = vld [vmem:[%s1012 + $0x2c0] sm:$0xff]
    %v1102 = vld [vmem:[%s1012 + $0x2c8] sm:$0xff]
    %v1103 = vld [vmem:[%s1012 + $0x2d0] sm:$0xff]
    %v1104 = vld [vmem:[%s1012 + $0x2d8] sm:$0xff]
    %v1105 = vld [vmem:[%s1012 + $0x2e0] sm:$0xff]
    %v1106 = vld [vmem:[%s1012 + $0x2e8] sm:$0xff]
    %v1107 = vld [vmem:[%s1012 + $0x2f0] sm:$0xff]
    %v1108 = vld [vmem:[%s1012 + $0x2f8] sm:$0xff]
    %v1109 = vld [vmem:[%s1012 + $0x300] sm:$0xff]
    %v1110 = vld [vmem:[%s1012 + $0x308] sm:$0xff]
    %v1111 = vld [vmem:[%s1012 + $0x310] sm:$0xff]
    %v1112 = vld [vmem:[%s1012 + $0x318] sm:$0xff]
    %v1113 = vld [vmem:[%s1012 + $0x320] sm:$0xff]
    %v1114 = vld [vmem:[%s1012 + $0x328] sm:$0xff]
    %v1115 = vld [vmem:[%s1012 + $0x330] sm:$0xff]
    %v1116 = vld [vmem:[%s1012 + $0x338] sm:$0xff]
    %v1117 = vld [vmem:[%s1012 + $0x340] sm:$0xff]
    %v1118 = vld [vmem:[%s1012 + $0x348] sm:$0xff]
    %v1119 = vld [vmem:[%s1012 + $0x350] sm:$0xff]
    %v1120 = vld [vmem:[%s1012 + $0x358] sm:$0xff]
    %v1121 = vld [vmem:[%s1012 + $0x360] sm:$0xff]
    %v1122 = vld [vmem:[%s1012 + $0x368] sm:$0xff]
    %v1123 = vld [vmem:[%s1012 + $0x370] sm:$0xff]
    %v1124 = vld [vmem:[%s1012 + $0x378] sm:$0xff]
    %v1125 = vld [vmem:[%s1012 + $0x380] sm:$0xff]
    %v1126 = vld [vmem:[%s1012 + $0x388] sm:$0xff]
    %v1127 = vld [vmem:[%s1012 + $0x390] sm:$0xff]
    %v1128 = vld [vmem:[%s1012 + $0x398] sm:$0xff]
    %v1129 = vld [vmem:[%s1012 + $0x3a0] sm:$0xff]
    %v1130 = vld [vmem:[%s1012 + $0x3a8] sm:$0xff]
    %v1131 = vld [vmem:[%s1012 + $0x3b0] sm:$0xff]
    %v1132 = vld [vmem:[%s1012 + $0x3b8] sm:$0xff]
    %v1133 = vld [vmem:[%s1012 + $0x3c0] sm:$0xff]
    %v1134 = vld [vmem:[%s1012 + $0x3c8] sm:$0xff]
    %v1135 = vld [vmem:[%s1012 + $0x3d0] sm:$0xff]
    %v1136 = vld [vmem:[%s1012 + $0x3d8] sm:$0xff]
    %v1137 = vld [vmem:[%s1012 + $0x3e0] sm:$0xff]
    %v1138 = vld [vmem:[%s1012 + $0x3e8] sm:$0xff]
    %v1139 = vld [vmem:[%s1012 + $0x3f0] sm:$0xff]
    %v1140 = vld [vmem:[%s1012 + $0x3f8] sm:$0xff]
    %v1141 = vmul.f32 %v1013, %v1008
    %v1142 = vmul.f32 %v1014, %v1009
    %v1143 = vmul.f32 %v1015, %v1010
    %v1144 = vmul.f32 %v1016, %v1011
    %v1145 = vmul.f32 %v1017, %v1008
    %v1146 = vmul.f32 %v1018, %v1009
    %v1147 = vmul.f32 %v1019, %v1010
    %v1148 = vmul.f32 %v1020, %v1011
    %v1149 = vmul.f32 %v1021, %v1008
    %v1150 = vmul.f32 %v1022, %v1009
    %v1151 = vmul.f32 %v1023, %v1010
    %v1152 = vmul.f32 %v1024, %v1011
    %v1153 = vmul.f32 %v1025, %v1008
    %v1154 = vmul.f32 %v1026, %v1009
    %v1155 = vmul.f32 %v1027, %v1010
    %v1156 = vmul.f32 %v1028, %v1011
    %v1157 = vmul.f32 %v1029, %v1008
    %v1158 = vmul.f32 %v1030, %v1009
    %v1159 = vmul.f32 %v1031, %v1010
    %v1160 = vmul.f32 %v1032, %v1011
    %v1161 = vmul.f32 %v1033, %v1008
    %v1162 = vmul.f32 %v1034, %v1009
    %v1163 = vmul.f32 %v1035, %v1010
    %v1164 = vmul.f32 %v1036, %v1011
    %v1165 = vmul.f32 %v1037, %v1008
    %v1166 = vmul.f32 %v1038, %v1009
    %v1167 = vmul.f32 %v1039, %v1010
    %v1168 = vmul.f32 %v1040, %v1011
    %v1169 = vmul.f32 %v1041, %v1008
    %v1170 = vmul.f32 %v1042, %v1009
    %v1171 = vmul.f32 %v1043, %v1010
    %v1172 = vmul.f32 %v1044, %v1011
    %v1173 = vmul.f32 %v1045, %v1008
    %v1174 = vmul.f32 %v1046, %v1009
    %v1175 = vmul.f32 %v1047, %v1010
    %v1176 = vmul.f32 %v1048, %v1011
    %v1177 = vmul.f32 %v1049, %v1008
    %v1178 = vmul.f32 %v1050, %v1009
    %v1179 = vmul.f32 %v1051, %v1010
    %v1180 = vmul.f32 %v1052, %v1011
    %v1181 = vmul.f32 %v1053, %v1008
    %v1182 = vmul.f32 %v1054, %v1009
    %v1183 = vmul.f32 %v1055, %v1010
    %v1184 = vmul.f32 %v1056, %v1011
    %v1185 = vmul.f32 %v1057, %v1008
    %v1186 = vmul.f32 %v1058, %v1009
    %v1187 = vmul.f32 %v1059, %v1010
    %v1188 = vmul.f32 %v1060, %v1011
    %v1189 = vmul.f32 %v1061, %v1008
    %v1190 = vmul.f32 %v1062, %v1009
    %v1191 = vmul.f32 %v1063, %v1010
    %v1192 = vmul.f32 %v1064, %v1011
    %v1193 = vmul.f32 %v1065, %v1008
    %v1194 = vmul.f32 %v1066, %v1009
    %v1195 = vmul.f32 %v1067, %v1010
    %v1196 = vmul.f32 %v1068, %v1011
    %v1197 = vmul.f32 %v1069, %v1008
    %v1198 = vmul.f32 %v1070, %v1009
    %v1199 = vmul.f32 %v1071, %v1010
    %v1200 = vmul.f32 %v1072, %v1011
    %v1201 = vmul.f32 %v1073, %v1008
    %v1202 = vmul.f32 %v1074, %v1009
    %v1203 = vmul.f32 %v1075, %v1010
    %v1204 = vmul.f32 %v1076, %v1011
    %v1205 = vmul.f32 %v1077, %v1008
    %v1206 = vmul.f32 %v1078, %v1009
    %v1207 = vmul.f32 %v1079, %v1010
    %v1208 = vmul.f32 %v1080, %v1011
    %v1209 = vmul.f32 %v1081, %v1008
    %v1210 = vmul.f32 %v1082, %v1009
    %v1211 = vmul.f32 %v1083, %v1010
    %v1212 = vmul.f32 %v1084, %v1011
    %v1213 = vmul.f32 %v1085, %v1008
    %v1214 = vmul.f32 %v1086, %v1009
    %v1215 = vmul.f32 %v1087, %v1010
    %v1216 = vmul.f32 %v1088, %v1011
    %v1217 = vmul.f32 %v1089, %v1008
    %v1218 = vmul.f32 %v1090, %v1009
    %v1219 = vmul.f32 %v1091, %v1010
    %v1220 = vmul.f32 %v1092, %v1011
    %v1221 = vmul.f32 %v1093, %v1008
    %v1222 = vmul.f32 %v1094, %v1009
    %v1223 = vmul.f32 %v1095, %v1010
    %v1224 = vmul.f32 %v1096, %v1011
    %v1225 = vmul.f32 %v1097, %v1008
    %v1226 = vmul.f32 %v1098, %v1009
    %v1227 = vmul.f32 %v1099, %v1010
    %v1228 = vmul.f32 %v1100, %v1011
    %v1229 = vmul.f32 %v1101, %v1008
    %v1230 = vmul.f32 %v1102, %v1009
    %v1231 = vmul.f32 %v1103, %v1010
    %v1232 = vmul.f32 %v1104, %v1011
    %v1233 = vmul.f32 %v1105, %v1008
    %v1234 = vmul.f32 %v1106, %v1009
    %v1235 = vmul.f32 %v1107, %v1010
    %v1236 = vmul.f32 %v1108, %v1011
    %v1237 = vmul.f32 %v1109, %v1008
    %v1238 = vmul.f32 %v1110, %v1009
    %v1239 = vmul.f32 %v1111, %v1010
    %v1240 = vmul.f32 %v1112, %v1011
    %v1241 = vmul.f32 %v1113, %v1008
    %v1242 = vmul.f32 %v1114, %v1009
    %v1243 = vmul.f32 %v1115, %v1010
    %v1244 = vmul.f32 %v1116, %v1011
    %v1245 = vmul.f32 %v1117, %v1008
    %v1246 = vmul.f32 %v1118, %v1009
    %v1247 = vmul.f32 %v1119, %v1010
    %v1248 = vmul.f32 %v1120, %v1011
    %v1249 = vmul.f32 %v1121, %v1008
    %v1250 = vmul.f32 %v1122, %v1009
    %v1251 = vmul.f32 %v1123, %v1010
    %v1252 = vmul.f32 %v1124, %v1011
    %v1253 = vmul.f32 %v1125, %v1008
    %v1254 = vmul.f32 %v1126, %v1009
    %v1255 = vmul.f32 %v1127, %v1010
    %v1256 = vmul.f32 %v1128, %v1011
    %v1257 = vmul.f32 %v1129, %v1008
    %v1258 = vmul.f32 %v1130, %v1009
    %v1259 = vmul.f32 %v1131, %v1010
    %v1260 = vmul.f32 %v1132, %v1011
    %v1261 = vmul.f32 %v1133, %v1008
    %v1262 = vmul.f32 %v1134, %v1009
    %v1263 = vmul.f32 %v1135, %v1010
    %v1264 = vmul.f32 %v1136, %v1011
    %v1265 = vmul.f32 %v1137, %v1008
    %v1266 = vmul.f32 %v1138, %v1009
    %v1267 = vmul.f32 %v1139, %v1010
    %v1268 = vmul.f32 %v1140, %v1011
    %v1269 = vsel %vm312, %v1141, 0.0
    %v1270 = vsel %vm312, %v1142, 0.0
    %v1271 = vadd.f32 %v1269, %v1270
    %v1272 = vsel %vm312, %v1143, 0.0
    %v1273 = vadd.f32 %v1271, %v1272
    %v1274 = vsel %vm312, %v1144, 0.0
    %v1275 = vadd.f32 %v1273, %v1274
    %v1276 = vrot.slane %v1275, 4
    %v1277 = vadd.f32 %v1275, %v1276
    %v1278 = vrot.slane %v1277, 2
    %v1279 = vadd.f32 %v1277, %v1278
    %v1280 = vrot.slane %v1279, 1
    %v1281 = vadd.f32 %v1279, %v1280
    %v1282 = vsel %vm312, %v1145, 0.0
    %v1283 = vsel %vm312, %v1146, 0.0
    %v1284 = vadd.f32 %v1282, %v1283
    %v1285 = vsel %vm312, %v1147, 0.0
    %v1286 = vadd.f32 %v1284, %v1285
    %v1287 = vsel %vm312, %v1148, 0.0
    %v1288 = vadd.f32 %v1286, %v1287
    %v1289 = vrot.slane %v1288, 4
    %v1290 = vadd.f32 %v1288, %v1289
    %v1291 = vrot.slane %v1290, 2
    %v1292 = vadd.f32 %v1290, %v1291
    %v1293 = vrot.slane %v1292, 1
    %v1294 = vadd.f32 %v1292, %v1293
    %v1295 = vsel %vm312, %v1149, 0.0
    %v1296 = vsel %vm312, %v1150, 0.0
    %v1297 = vadd.f32 %v1295, %v1296
    %v1298 = vsel %vm312, %v1151, 0.0
    %v1299 = vadd.f32 %v1297, %v1298
    %v1300 = vsel %vm312, %v1152, 0.0
    %v1301 = vadd.f32 %v1299, %v1300
    %v1302 = vrot.slane %v1301, 4
    %v1303 = vadd.f32 %v1301, %v1302
    %v1304 = vrot.slane %v1303, 2
    %v1305 = vadd.f32 %v1303, %v1304
    %v1306 = vrot.slane %v1305, 1
    %v1307 = vadd.f32 %v1305, %v1306
    %v1308 = vsel %vm312, %v1153, 0.0
    %v1309 = vsel %vm312, %v1154, 0.0
    %v1310 = vadd.f32 %v1308, %v1309
    %v1311 = vsel %vm312, %v1155, 0.0
    %v1312 = vadd.f32 %v1310, %v1311
    %v1313 = vsel %vm312, %v1156, 0.0
    %v1314 = vadd.f32 %v1312, %v1313
    %v1315 = vrot.slane %v1314, 4
    %v1316 = vadd.f32 %v1314, %v1315
    %v1317 = vrot.slane %v1316, 2
    %v1318 = vadd.f32 %v1316, %v1317
    %v1319 = vrot.slane %v1318, 1
    %v1320 = vadd.f32 %v1318, %v1319
    %v1321 = vsel %vm312, %v1157, 0.0
    %v1322 = vsel %vm312, %v1158, 0.0
    %v1323 = vadd.f32 %v1321, %v1322
    %v1324 = vsel %vm312, %v1159, 0.0
    %v1325 = vadd.f32 %v1323, %v1324
    %v1326 = vsel %vm312, %v1160, 0.0
    %v1327 = vadd.f32 %v1325, %v1326
    %v1328 = vrot.slane %v1327, 4
    %v1329 = vadd.f32 %v1327, %v1328
    %v1330 = vrot.slane %v1329, 2
    %v1331 = vadd.f32 %v1329, %v1330
    %v1332 = vrot.slane %v1331, 1
    %v1333 = vadd.f32 %v1331, %v1332
    %v1334 = vsel %vm312, %v1161, 0.0
    %v1335 = vsel %vm312, %v1162, 0.0
    %v1336 = vadd.f32 %v1334, %v1335
    %v1337 = vsel %vm312, %v1163, 0.0
    %v1338 = vadd.f32 %v1336, %v1337
    %v1339 = vsel %vm312, %v1164, 0.0
    %v1340 = vadd.f32 %v1338, %v1339
    %v1341 = vrot.slane %v1340, 4
    %v1342 = vadd.f32 %v1340, %v1341
    %v1343 = vrot.slane %v1342, 2
    %v1344 = vadd.f32 %v1342, %v1343
    %v1345 = vrot.slane %v1344, 1
    %v1346 = vadd.f32 %v1344, %v1345
    %v1347 = vsel %vm312, %v1165, 0.0
    %v1348 = vsel %vm312, %v1166, 0.0
    %v1349 = vadd.f32 %v1347, %v1348
    %v1350 = vsel %vm312, %v1167, 0.0
    %v1351 = vadd.f32 %v1349, %v1350
    %v1352 = vsel %vm312, %v1168, 0.0
    %v1353 = vadd.f32 %v1351, %v1352
    %v1354 = vrot.slane %v1353, 4
    %v1355 = vadd.f32 %v1353, %v1354
    %v1356 = vrot.slane %v1355, 2
    %v1357 = vadd.f32 %v1355, %v1356
    %v1358 = vrot.slane %v1357, 1
    %v1359 = vadd.f32 %v1357, %v1358
    %v1360 = vsel %vm312, %v1169, 0.0
    %v1361 = vsel %vm312, %v1170, 0.0
    %v1362 = vadd.f32 %v1360, %v1361
    %v1363 = vsel %vm312, %v1171, 0.0
    %v1364 = vadd.f32 %v1362, %v1363
    %v1365 = vsel %vm312, %v1172, 0.0
    %v1366 = vadd.f32 %v1364, %v1365
    %v1367 = vrot.slane %v1366, 4
    %v1368 = vadd.f32 %v1366, %v1367
    %v1369 = vrot.slane %v1368, 2
    %v1370 = vadd.f32 %v1368, %v1369
    %v1371 = vrot.slane %v1370, 1
    %v1372 = vadd.f32 %v1370, %v1371
    %v1373 = vsel %vm312, %v1173, 0.0
    %v1374 = vsel %vm312, %v1174, 0.0
    %v1375 = vadd.f32 %v1373, %v1374
    %v1376 = vsel %vm312, %v1175, 0.0
    %v1377 = vadd.f32 %v1375, %v1376
    %v1378 = vsel %vm312, %v1176, 0.0
    %v1379 = vadd.f32 %v1377, %v1378
    %v1380 = vrot.slane %v1379, 4
    %v1381 = vadd.f32 %v1379, %v1380
    %v1382 = vrot.slane %v1381, 2
    %v1383 = vadd.f32 %v1381, %v1382
    %v1384 = vrot.slane %v1383, 1
    %v1385 = vadd.f32 %v1383, %v1384
    %v1386 = vsel %vm312, %v1177, 0.0
    %v1387 = vsel %vm312, %v1178, 0.0
    %v1388 = vadd.f32 %v1386, %v1387
    %v1389 = vsel %vm312, %v1179, 0.0
    %v1390 = vadd.f32 %v1388, %v1389
    %v1391 = vsel %vm312, %v1180, 0.0
    %v1392 = vadd.f32 %v1390, %v1391
    %v1393 = vrot.slane %v1392, 4
    %v1394 = vadd.f32 %v1392, %v1393
    %v1395 = vrot.slane %v1394, 2
    %v1396 = vadd.f32 %v1394, %v1395
    %v1397 = vrot.slane %v1396, 1
    %v1398 = vadd.f32 %v1396, %v1397
    %v1399 = vsel %vm312, %v1181, 0.0
    %v1400 = vsel %vm312, %v1182, 0.0
    %v1401 = vadd.f32 %v1399, %v1400
    %v1402 = vsel %vm312, %v1183, 0.0
    %v1403 = vadd.f32 %v1401, %v1402
    %v1404 = vsel %vm312, %v1184, 0.0
    %v1405 = vadd.f32 %v1403, %v1404
    %v1406 = vrot.slane %v1405, 4
    %v1407 = vadd.f32 %v1405, %v1406
    %v1408 = vrot.slane %v1407, 2
    %v1409 = vadd.f32 %v1407, %v1408
    %v1410 = vrot.slane %v1409, 1
    %v1411 = vadd.f32 %v1409, %v1410
    %v1412 = vsel %vm312, %v1185, 0.0
    %v1413 = vsel %vm312, %v1186, 0.0
    %v1414 = vadd.f32 %v1412, %v1413
    %v1415 = vsel %vm312, %v1187, 0.0
    %v1416 = vadd.f32 %v1414, %v1415
    %v1417 = vsel %vm312, %v1188, 0.0
    %v1418 = vadd.f32 %v1416, %v1417
    %v1419 = vrot.slane %v1418, 4
    %v1420 = vadd.f32 %v1418, %v1419
    %v1421 = vrot.slane %v1420, 2
    %v1422 = vadd.f32 %v1420, %v1421
    %v1423 = vrot.slane %v1422, 1
    %v1424 = vadd.f32 %v1422, %v1423
    %v1425 = vsel %vm312, %v1189, 0.0
    %v1426 = vsel %vm312, %v1190, 0.0
    %v1427 = vadd.f32 %v1425, %v1426
    %v1428 = vsel %vm312, %v1191, 0.0
    %v1429 = vadd.f32 %v1427, %v1428
    %v1430 = vsel %vm312, %v1192, 0.0
    %v1431 = vadd.f32 %v1429, %v1430
    %v1432 = vrot.slane %v1431, 4
    %v1433 = vadd.f32 %v1431, %v1432
    %v1434 = vrot.slane %v1433, 2
    %v1435 = vadd.f32 %v1433, %v1434
    %v1436 = vrot.slane %v1435, 1
    %v1437 = vadd.f32 %v1435, %v1436
    %v1438 = vsel %vm312, %v1193, 0.0
    %v1439 = vsel %vm312, %v1194, 0.0
    %v1440 = vadd.f32 %v1438, %v1439
    %v1441 = vsel %vm312, %v1195, 0.0
    %v1442 = vadd.f32 %v1440, %v1441
    %v1443 = vsel %vm312, %v1196, 0.0
    %v1444 = vadd.f32 %v1442, %v1443
    %v1445 = vrot.slane %v1444, 4
    %v1446 = vadd.f32 %v1444, %v1445
    %v1447 = vrot.slane %v1446, 2
    %v1448 = vadd.f32 %v1446, %v1447
    %v1449 = vrot.slane %v1448, 1
    %v1450 = vadd.f32 %v1448, %v1449
    %v1451 = vsel %vm312, %v1197, 0.0
    %v1452 = vsel %vm312, %v1198, 0.0
    %v1453 = vadd.f32 %v1451, %v1452
    %v1454 = vsel %vm312, %v1199, 0.0
    %v1455 = vadd.f32 %v1453, %v1454
    %v1456 = vsel %vm312, %v1200, 0.0
    %v1457 = vadd.f32 %v1455, %v1456
    %v1458 = vrot.slane %v1457, 4
    %v1459 = vadd.f32 %v1457, %v1458
    %v1460 = vrot.slane %v1459, 2
    %v1461 = vadd.f32 %v1459, %v1460
    %v1462 = vrot.slane %v1461, 1
    %v1463 = vadd.f32 %v1461, %v1462
    %v1464 = vsel %vm312, %v1201, 0.0
    %v1465 = vsel %vm312, %v1202, 0.0
    %v1466 = vadd.f32 %v1464, %v1465
    %v1467 = vsel %vm312, %v1203, 0.0
    %v1468 = vadd.f32 %v1466, %v1467
    %v1469 = vsel %vm312, %v1204, 0.0
    %v1470 = vadd.f32 %v1468, %v1469
    %v1471 = vrot.slane %v1470, 4
    %v1472 = vadd.f32 %v1470, %v1471
    %v1473 = vrot.slane %v1472, 2
    %v1474 = vadd.f32 %v1472, %v1473
    %v1475 = vrot.slane %v1474, 1
    %v1476 = vadd.f32 %v1474, %v1475
    %v1477 = vsel %vm312, %v1205, 0.0
    %v1478 = vsel %vm312, %v1206, 0.0
    %v1479 = vadd.f32 %v1477, %v1478
    %v1480 = vsel %vm312, %v1207, 0.0
    %v1481 = vadd.f32 %v1479, %v1480
    %v1482 = vsel %vm312, %v1208, 0.0
    %v1483 = vadd.f32 %v1481, %v1482
    %v1484 = vrot.slane %v1483, 4
    %v1485 = vadd.f32 %v1483, %v1484
    %v1486 = vrot.slane %v1485, 2
    %v1487 = vadd.f32 %v1485, %v1486
    %v1488 = vrot.slane %v1487, 1
    %v1489 = vadd.f32 %v1487, %v1488
    %v1490 = vsel %vm312, %v1209, 0.0
    %v1491 = vsel %vm312, %v1210, 0.0
    %v1492 = vadd.f32 %v1490, %v1491
    %v1493 = vsel %vm312, %v1211, 0.0
    %v1494 = vadd.f32 %v1492, %v1493
    %v1495 = vsel %vm312, %v1212, 0.0
    %v1496 = vadd.f32 %v1494, %v1495
    %v1497 = vrot.slane %v1496, 4
    %v1498 = vadd.f32 %v1496, %v1497
    %v1499 = vrot.slane %v1498, 2
    %v1500 = vadd.f32 %v1498, %v1499
    %v1501 = vrot.slane %v1500, 1
    %v1502 = vadd.f32 %v1500, %v1501
    %v1503 = vsel %vm312, %v1213, 0.0
    %v1504 = vsel %vm312, %v1214, 0.0
    %v1505 = vadd.f32 %v1503, %v1504
    %v1506 = vsel %vm312, %v1215, 0.0
    %v1507 = vadd.f32 %v1505, %v1506
    %v1508 = vsel %vm312, %v1216, 0.0
    %v1509 = vadd.f32 %v1507, %v1508
    %v1510 = vrot.slane %v1509, 4
    %v1511 = vadd.f32 %v1509, %v1510
    %v1512 = vrot.slane %v1511, 2
    %v1513 = vadd.f32 %v1511, %v1512
    %v1514 = vrot.slane %v1513, 1
    %v1515 = vadd.f32 %v1513, %v1514
    %v1516 = vsel %vm312, %v1217, 0.0
    %v1517 = vsel %vm312, %v1218, 0.0
    %v1518 = vadd.f32 %v1516, %v1517
    %v1519 = vsel %vm312, %v1219, 0.0
    %v1520 = vadd.f32 %v1518, %v1519
    %v1521 = vsel %vm312, %v1220, 0.0
    %v1522 = vadd.f32 %v1520, %v1521
    %v1523 = vrot.slane %v1522, 4
    %v1524 = vadd.f32 %v1522, %v1523
    %v1525 = vrot.slane %v1524, 2
    %v1526 = vadd.f32 %v1524, %v1525
    %v1527 = vrot.slane %v1526, 1
    %v1528 = vadd.f32 %v1526, %v1527
    %v1529 = vsel %vm312, %v1221, 0.0
    %v1530 = vsel %vm312, %v1222, 0.0
    %v1531 = vadd.f32 %v1529, %v1530
    %v1532 = vsel %vm312, %v1223, 0.0
    %v1533 = vadd.f32 %v1531, %v1532
    %v1534 = vsel %vm312, %v1224, 0.0
    %v1535 = vadd.f32 %v1533, %v1534
    %v1536 = vrot.slane %v1535, 4
    %v1537 = vadd.f32 %v1535, %v1536
    %v1538 = vrot.slane %v1537, 2
    %v1539 = vadd.f32 %v1537, %v1538
    %v1540 = vrot.slane %v1539, 1
    %v1541 = vadd.f32 %v1539, %v1540
    %v1542 = vsel %vm312, %v1225, 0.0
    %v1543 = vsel %vm312, %v1226, 0.0
    %v1544 = vadd.f32 %v1542, %v1543
    %v1545 = vsel %vm312, %v1227, 0.0
    %v1546 = vadd.f32 %v1544, %v1545
    %v1547 = vsel %vm312, %v1228, 0.0
    %v1548 = vadd.f32 %v1546, %v1547
    %v1549 = vrot.slane %v1548, 4
    %v1550 = vadd.f32 %v1548, %v1549
    %v1551 = vrot.slane %v1550, 2
    %v1552 = vadd.f32 %v1550, %v1551
    %v1553 = vrot.slane %v1552, 1
    %v1554 = vadd.f32 %v1552, %v1553
    %v1555 = vsel %vm312, %v1229, 0.0
    %v1556 = vsel %vm312, %v1230, 0.0
    %v1557 = vadd.f32 %v1555, %v1556
    %v1558 = vsel %vm312, %v1231, 0.0
    %v1559 = vadd.f32 %v1557, %v1558
    %v1560 = vsel %vm312, %v1232, 0.0
    %v1561 = vadd.f32 %v1559, %v1560
    %v1562 = vrot.slane %v1561, 4
    %v1563 = vadd.f32 %v1561, %v1562
    %v1564 = vrot.slane %v1563, 2
    %v1565 = vadd.f32 %v1563, %v1564
    %v1566 = vrot.slane %v1565, 1
    %v1567 = vadd.f32 %v1565, %v1566
    %v1568 = vsel %vm312, %v1233, 0.0
    %v1569 = vsel %vm312, %v1234, 0.0
    %v1570 = vadd.f32 %v1568, %v1569
    %v1571 = vsel %vm312, %v1235, 0.0
    %v1572 = vadd.f32 %v1570, %v1571
    %v1573 = vsel %vm312, %v1236, 0.0
    %v1574 = vadd.f32 %v1572, %v1573
    %v1575 = vrot.slane %v1574, 4
    %v1576 = vadd.f32 %v1574, %v1575
    %v1577 = vrot.slane %v1576, 2
    %v1578 = vadd.f32 %v1576, %v1577
    %v1579 = vrot.slane %v1578, 1
    %v1580 = vadd.f32 %v1578, %v1579
    %v1581 = vsel %vm312, %v1237, 0.0
    %v1582 = vsel %vm312, %v1238, 0.0
    %v1583 = vadd.f32 %v1581, %v1582
    %v1584 = vsel %vm312, %v1239, 0.0
    %v1585 = vadd.f32 %v1583, %v1584
    %v1586 = vsel %vm312, %v1240, 0.0
    %v1587 = vadd.f32 %v1585, %v1586
    %v1588 = vrot.slane %v1587, 4
    %v1589 = vadd.f32 %v1587, %v1588
    %v1590 = vrot.slane %v1589, 2
    %v1591 = vadd.f32 %v1589, %v1590
    %v1592 = vrot.slane %v1591, 1
    %v1593 = vadd.f32 %v1591, %v1592
    %v1594 = vsel %vm312, %v1241, 0.0
    %v1595 = vsel %vm312, %v1242, 0.0
    %v1596 = vadd.f32 %v1594, %v1595
    %v1597 = vsel %vm312, %v1243, 0.0
    %v1598 = vadd.f32 %v1596, %v1597
    %v1599 = vsel %vm312, %v1244, 0.0
    %v1600 = vadd.f32 %v1598, %v1599
    %v1601 = vrot.slane %v1600, 4
    %v1602 = vadd.f32 %v1600, %v1601
    %v1603 = vrot.slane %v1602, 2
    %v1604 = vadd.f32 %v1602, %v1603
    %v1605 = vrot.slane %v1604, 1
    %v1606 = vadd.f32 %v1604, %v1605
    %v1607 = vsel %vm312, %v1245, 0.0
    %v1608 = vsel %vm312, %v1246, 0.0
    %v1609 = vadd.f32 %v1607, %v1608
    %v1610 = vsel %vm312, %v1247, 0.0
    %v1611 = vadd.f32 %v1609, %v1610
    %v1612 = vsel %vm312, %v1248, 0.0
    %v1613 = vadd.f32 %v1611, %v1612
    %v1614 = vrot.slane %v1613, 4
    %v1615 = vadd.f32 %v1613, %v1614
    %v1616 = vrot.slane %v1615, 2
    %v1617 = vadd.f32 %v1615, %v1616
    %v1618 = vrot.slane %v1617, 1
    %v1619 = vadd.f32 %v1617, %v1618
    %v1620 = vsel %vm312, %v1249, 0.0
    %v1621 = vsel %vm312, %v1250, 0.0
    %v1622 = vadd.f32 %v1620, %v1621
    %v1623 = vsel %vm312, %v1251, 0.0
    %v1624 = vadd.f32 %v1622, %v1623
    %v1625 = vsel %vm312, %v1252, 0.0
    %v1626 = vadd.f32 %v1624, %v1625
    %v1627 = vrot.slane %v1626, 4
    %v1628 = vadd.f32 %v1626, %v1627
    %v1629 = vrot.slane %v1628, 2
    %v1630 = vadd.f32 %v1628, %v1629
    %v1631 = vrot.slane %v1630, 1
    %v1632 = vadd.f32 %v1630, %v1631
    %v1633 = vsel %vm312, %v1253, 0.0
    %v1634 = vsel %vm312, %v1254, 0.0
    %v1635 = vadd.f32 %v1633, %v1634
    %v1636 = vsel %vm312, %v1255, 0.0
    %v1637 = vadd.f32 %v1635, %v1636
    %v1638 = vsel %vm312, %v1256, 0.0
    %v1639 = vadd.f32 %v1637, %v1638
    %v1640 = vrot.slane %v1639, 4
    %v1641 = vadd.f32 %v1639, %v1640
    %v1642 = vrot.slane %v1641, 2
    %v1643 = vadd.f32 %v1641, %v1642
    %v1644 = vrot.slane %v1643, 1
    %v1645 = vadd.f32 %v1643, %v1644
    %v1646 = vsel %vm312, %v1257, 0.0
    %v1647 = vsel %vm312, %v1258, 0.0
    %v1648 = vadd.f32 %v1646, %v1647
    %v1649 = vsel %vm312, %v1259, 0.0
    %v1650 = vadd.f32 %v1648, %v1649
    %v1651 = vsel %vm312, %v1260, 0.0
    %v1652 = vadd.f32 %v1650, %v1651
    %v1653 = vrot.slane %v1652, 4
    %v1654 = vadd.f32 %v1652, %v1653
    %v1655 = vrot.slane %v1654, 2
    %v1656 = vadd.f32 %v1654, %v1655
    %v1657 = vrot.slane %v1656, 1
    %v1658 = vadd.f32 %v1656, %v1657
    %v1659 = vsel %vm312, %v1261, 0.0
    %v1660 = vsel %vm312, %v1262, 0.0
    %v1661 = vadd.f32 %v1659, %v1660
    %v1662 = vsel %vm312, %v1263, 0.0
    %v1663 = vadd.f32 %v1661, %v1662
    %v1664 = vsel %vm312, %v1264, 0.0
    %v1665 = vadd.f32 %v1663, %v1664
    %v1666 = vrot.slane %v1665, 4
    %v1667 = vadd.f32 %v1665, %v1666
    %v1668 = vrot.slane %v1667, 2
    %v1669 = vadd.f32 %v1667, %v1668
    %v1670 = vrot.slane %v1669, 1
    %v1671 = vadd.f32 %v1669, %v1670
    %v1672 = vsel %vm312, %v1265, 0.0
    %v1673 = vsel %vm312, %v1266, 0.0
    %v1674 = vadd.f32 %v1672, %v1673
    %v1675 = vsel %vm312, %v1267, 0.0
    %v1676 = vadd.f32 %v1674, %v1675
    %v1677 = vsel %vm312, %v1268, 0.0
    %v1678 = vadd.f32 %v1676, %v1677
    %v1679 = vrot.slane %v1678, 4
    %v1680 = vadd.f32 %v1678, %v1679
    %v1681 = vrot.slane %v1680, 2
    %v1682 = vadd.f32 %v1680, %v1681
    %v1683 = vrot.slane %v1682, 1
    %v1684 = vadd.f32 %v1682, %v1683
    %s1685 = scalar_lea.vmem %s3, 1
    %v1686 = vld [vmem:[%s1685] sm:$0x1]
    %v1688 = vperm.slane %v1686, 0
    %v1690 = vmul.f32 %v1008, %v1688
    %v1691 = vmul.f32 %v1009, %v1688
    %v1692 = vmul.f32 %v1010, %v1688
    %v1693 = vmul.f32 %v1011, %v1688
    %v1726 = vsel %vm769, %v1294, %v1281
    %v1727 = vsel %vm771, %v1307, %v1726
    %v1728 = vsel %vm773, %v1320, %v1727
    %v1729 = vsel %vm775, %v1333, %v1728
    %v1730 = vsel %vm777, %v1346, %v1729
    %v1731 = vsel %vm779, %v1359, %v1730
    %v1732 = vsel %vm781, %v1372, %v1731
    %v1733 = vsel %vm769, %v1398, %v1385
    %v1734 = vsel %vm771, %v1411, %v1733
    %v1735 = vsel %vm773, %v1424, %v1734
    %v1736 = vsel %vm775, %v1437, %v1735
    %v1737 = vsel %vm777, %v1450, %v1736
    %v1738 = vsel %vm779, %v1463, %v1737
    %v1739 = vsel %vm781, %v1476, %v1738
    %v1740 = vsel %vm769, %v1502, %v1489
    %v1741 = vsel %vm771, %v1515, %v1740
    %v1742 = vsel %vm773, %v1528, %v1741
    %v1743 = vsel %vm775, %v1541, %v1742
    %v1744 = vsel %vm777, %v1554, %v1743
    %v1745 = vsel %vm779, %v1567, %v1744
    %v1746 = vsel %vm781, %v1580, %v1745
    %v1747 = vsel %vm769, %v1606, %v1593
    %v1748 = vsel %vm771, %v1619, %v1747
    %v1749 = vsel %vm773, %v1632, %v1748
    %v1750 = vsel %vm775, %v1645, %v1749
    %v1751 = vsel %vm777, %v1658, %v1750
    %v1752 = vsel %vm779, %v1671, %v1751
    %v1753 = vsel %vm781, %v1684, %v1752
    %v1758 = vadd.f32 %v1690, %v1732
    %v1759 = vadd.f32 %v1691, %v1739
    %v1760 = vadd.f32 %v1692, %v1746
    %v1761 = vadd.f32 %v1693, %v1753
    %v1762 = vmul.f32 %v1758, %v1758
    %v1763 = vmul.f32 %v1759, %v1759
    %v1764 = vmul.f32 %v1760, %v1760
    %v1765 = vmul.f32 %v1761, %v1761
    %v1766 = vmul.f32 %v1758, %v1762
    %v1767 = vmul.f32 %v1759, %v1763
    %v1768 = vmul.f32 %v1760, %v1764
    %v1769 = vmul.f32 %v1761, %v1765
    %v1770 = vmul.f32 %v1766, 0.044715
    %v1771 = vmul.f32 %v1767, 0.044715
    %v1772 = vmul.f32 %v1768, 0.044715
    %v1773 = vmul.f32 %v1769, 0.044715
    %v1774 = vadd.f32 %v1758, %v1770
    %v1775 = vadd.f32 %v1759, %v1771
    %v1776 = vadd.f32 %v1760, %v1772
    %v1777 = vadd.f32 %v1761, %v1773
    %v1778 = vmul.f32 %v1774, 0.7978846
    %v1779 = vmul.f32 %v1775, 0.7978846
    %v1780 = vmul.f32 %v1776, 0.7978846
    %v1781 = vmul.f32 %v1777, 0.7978846
    %v1782 = vtanh.pop %v1778
    %v1783 = vtanh.pop %v1779
    %v1784 = vtanh.pop %v1780
    %v1785 = vtanh.pop %v1781
    %v1786 = vadd.f32 %v1782, 1.0
    %v1787 = vadd.f32 %v1783, 1.0
    %v1788 = vadd.f32 %v1784, 1.0
    %v1789 = vadd.f32 %v1785, 1.0
    %v1790 = vmul.f32 %v1786, 0.5
    %v1791 = vmul.f32 %v1787, 0.5
    %v1792 = vmul.f32 %v1788, 0.5
    %v1793 = vmul.f32 %v1789, 0.5
    %v1794 = vmul.f32 %v1758, %v1790
    %v1795 = vmul.f32 %v1759, %v1791
    %v1796 = vmul.f32 %v1760, %v1792
    %v1797 = vmul.f32 %v1761, %v1793
    %s1798 = scalar_lea.vmem %s4, 32
    %v1799 = vld [vmem:[%s1798] sm:$0xff]
    %v1800 = vld [vmem:[%s1798 + $0x8] sm:$0xff]
    %v1801 = vld [vmem:[%s1798 + $0x10] sm:$0xff]
    %v1802 = vld [vmem:[%s1798 + $0x18] sm:$0xff]
    %s1803 = scalar_lea.vmem %s5, 1
    %v1804 = vld [vmem:[%s1803] sm:$0x1]
    %v1806 = vperm.slane %v1804, 0
    %v1809 = vsel %vm312, %v1794, 0
    %v1812 = vsel %vm312, %v1795, 0
    %v1815 = vsel %vm312, %v1796, 0
    %v1818 = vsel %vm312, %v1797, 0
    %1820 = vmatpush.msra.mxu0 0.0
    %1821 = vmatpush.msra.mxu0 0.0
    %1822 = vmatpush.msra.mxu0 0.0
    %1823 = vmatpush.msra.mxu0 0.0
    %1824 = vmatpush.msra.mxu0 0.0
    %1825 = vmatpush.msra.mxu0 0.0
    %1826 = vmatpush.msra.mxu0 0.0
    %1827 = vmatpush.msra.mxu0 0.0
    %1828 = vmatpush.msra.mxu0 0.0
    %1829 = vmatpush.msra.mxu0 0.0
    %1830 = vmatpush.msra.mxu0 0.0
    %1831 = vmatpush.msra.mxu0 0.0
    %1832 = vmatpush.msra.mxu0 %v1802
    %1833 = vmatpush.msra.mxu0 %v1801
    %1834 = vmatpush.msra.mxu0 %v1800
    %1835 = vmatpush.msra.mxu0 %v1799
    %1836 = vmatmul.f32.gmra.mxu0 %v1809
    %v1837 = vpop.f32.mrf.mxu0
    %v1838 = vadd.f32 %v1806, %v1837
    %1839 = vmatmul.f32.gmra.mxu0 %v1812
    %v1840 = vpop.f32.mrf.mxu0
    %v1841 = vadd.f32 %v1806, %v1840
    %1842 = vmatmul.f32.gmra.mxu0 %v1815
    %v1843 = vpop.f32.mrf.mxu0
    %v1844 = vadd.f32 %v1806, %v1843
    %1845 = vmatmul.f32.gmra.mxu0 %v1818
    %v1846 = vpop.f32.mrf.mxu0
    %v1847 = vadd.f32 %v1806, %v1846
    %1848 = vdwg.mxu0
    %v1849 = vadd.f32 %v1838, %v1008
    %v1850 = vadd.f32 %v1841, %v1009
    %v1851 = vadd.f32 %v1844, %v1010
    %v1852 = vadd.f32 %v1847, %v1011
    %v1853 = vsel %vm312, %v1849, 0.0
    %1854 = vadd.xlane.f32.xlu0 %v1853
    %v1855 = vpop.xlane.xlu0 %1854
    %v1856 = vsel %vm312, %v1850, 0.0
    %1857 = vadd.xlane.f32.xlu0 %v1856
    %v1858 = vpop.xlane.xlu0 %1857
    %v1859 = vsel %vm312, %v1851, 0.0
    %1860 = vadd.xlane.f32.xlu0 %v1859
    %v1861 = vpop.xlane.xlu0 %1860
    %v1862 = vsel %vm312, %v1852, 0.0
    %1863 = vadd.xlane.f32.xlu0 %v1862
    %v1864 = vpop.xlane.xlu0 %1863
    %v1865 = vmul.f32 %v1855, %v919
    %v1866 = vmul.f32 %v1858, %v919
    %v1867 = vmul.f32 %v1861, %v919
    %v1868 = vmul.f32 %v1864, %v919
    %v1869 = vsub.f32 %v1849, %v1865
    %v1870 = vsub.f32 %v1850, %v1866
    %v1871 = vsub.f32 %v1851, %v1867
    %v1872 = vsub.f32 %v1852, %v1868
    %v1873 = vmul.f32 %v1869, %v1869
    %v1874 = vmul.f32 %v1870, %v1870
    %v1875 = vmul.f32 %v1871, %v1871
    %v1876 = vmul.f32 %v1872, %v1872
    %v1877 = vsel %vm312, %v1873, 0.0
    %1878 = vadd.xlane.f32.xlu0 %v1877
    %v1879 = vpop.xlane.xlu0 %1878
    %v1880 = vsel %vm312, %v1874, 0.0
    %1881 = vadd.xlane.f32.xlu0 %v1880
    %v1882 = vpop.xlane.xlu0 %1881
    %v1883 = vsel %vm312, %v1875, 0.0
    %1884 = vadd.xlane.f32.xlu0 %v1883
    %v1885 = vpop.xlane.xlu0 %1884
    %v1886 = vsel %vm312, %v1876, 0.0
    %1887 = vadd.xlane.f32.xlu0 %v1886
    %v1888 = vpop.xlane.xlu0 %1887
    %v1889 = vmul.f32 %v1879, %v919
    %v1890 = vmul.f32 %v1882, %v919
    %v1891 = vmul.f32 %v1885, %v919
    %v1892 = vmul.f32 %v1888, %v919
    %v1893 = vadd.f32 %v1889, 1e-05
    %v1894 = vadd.f32 %v1890, 1e-05
    %v1895 = vadd.f32 %v1891, 1e-05
    %v1896 = vadd.f32 %v1892, 1e-05
    %v1897 = vrsqrt.pop %v1893
    %v1898 = vmul.f32 %v1897, %v1893
    %v1899 = vmul.f32 %v1898, %v1897
    %v1900 = vmul.f32 0.5, %v1899
    %v1901 = vsub.f32 1.5, %v1900
    %v1902 = vmul.f32 %v1897, %v1901
    %vm1903 = vweird.f32 %v1893
    %vm1904 = vweird.f32 %v1897
    %vm1905 = vmor %vm1903, %vm1904
    %v1906 = vsel %vm1905, %v1897, %v1902
    %v1907 = vrsqrt.pop %v1894
    %v1908 = vmul.f32 %v1907, %v1894
    %v1909 = vmul.f32 %v1908, %v1907
    %v1910 = vmul.f32 0.5, %v1909
    %v1911 = vsub.f32 1.5, %v1910
    %v1912 = vmul.f32 %v1907, %v1911
    %vm1913 = vweird.f32 %v1894
    %vm1914 = vweird.f32 %v1907
    %vm1915 = vmor %vm1913, %vm1914
    %v1916 = vsel %vm1915, %v1907, %v1912
    %v1917 = vrsqrt.pop %v1895
    %v1918 = vmul.f32 %v1917, %v1895
    %v1919 = vmul.f32 %v1918, %v1917
    %v1920 = vmul.f32 0.5, %v1919
    %v1921 = vsub.f32 1.5, %v1920
    %v1922 = vmul.f32 %v1917, %v1921
    %vm1923 = vweird.f32 %v1895
    %vm1924 = vweird.f32 %v1917
    %vm1925 = vmor %vm1923, %vm1924
    %v1926 = vsel %vm1925, %v1917, %v1922
    %v1927 = vrsqrt.pop %v1896
    %v1928 = vmul.f32 %v1927, %v1896
    %v1929 = vmul.f32 %v1928, %v1927
    %v1930 = vmul.f32 0.5, %v1929
    %v1931 = vsub.f32 1.5, %v1930
    %v1932 = vmul.f32 %v1927, %v1931
    %vm1933 = vweird.f32 %v1896
    %vm1934 = vweird.f32 %v1927
    %vm1935 = vmor %vm1933, %vm1934
    %v1936 = vsel %vm1935, %v1927, %v1932
    %v1937 = vmul.f32 %v1869, %v1906
    %v1938 = vmul.f32 %v1870, %v1916
    %v1939 = vmul.f32 %v1871, %v1926
    %v1940 = vmul.f32 %v1872, %v1936
    %s1941 = scalar_lea.vmem %s6, 1
    %v1942 = vld [vmem:[%s1941] sm:$0x1]
    %v1944 = vperm.slane %v1942, 0
    %v1946 = vmul.f32 %v1937, %v1944
    %v1947 = vmul.f32 %v1938, %v1944
    %v1948 = vmul.f32 %v1939, %v1944
    %v1949 = vmul.f32 %v1940, %v1944
    %s1950 = scalar_lea.vmem %s7, 1
    %v1951 = vld [vmem:[%s1950] sm:$0x1]
    %v1953 = vperm.slane %v1951, 0
    %v1955 = vadd.f32 %v1946, %v1953
    %v1956 = vadd.f32 %v1947, %v1953
    %v1957 = vadd.f32 %v1948, %v1953
    %v1958 = vadd.f32 %v1949, %v1953
    %v1959 = vld [vmem:[%s1] sm:$0x3]
    %v1961 = vsel %vm312, %v1959, 0
    %1963 = vmatpush.msra.mxu0 0.0
    %1964 = vmatpush.msra.mxu0 0.0
    %1965 = vmatpush.msra.mxu0 0.0
    %1966 = vmatpush.msra.mxu0 0.0
    %1967 = vmatpush.msra.mxu0 0.0
    %1968 = vmatpush.msra.mxu0 0.0
    %1969 = vmatpush.msra.mxu0 0.0
    %1970 = vmatpush.msra.mxu0 0.0
    %1971 = vmatpush.msra.mxu0 0.0
    %1972 = vmatpush.msra.mxu0 0.0
    %1973 = vmatpush.msra.mxu0 0.0
    %1974 = vmatpush.msra.mxu0 0.0
    %1975 = vmatpush.msra.mxu0 %v1958
    %1976 = vmatpush.msra.mxu0 %v1957
    %1977 = vmatpush.msra.mxu0 %v1956
    %1978 = vmatpush.msra.mxu0 %v1955
    %1979 = vmatmul.f32.gmra.mxu0 %v1961
    %v1980 = vpop.f32.mrf.mxu0
    %v1981 = vadd.f32 0.0, %v1980
    %1982 = vdwg.mxu0
    %v1983 = vmul.f32 %v1981, %v1981
    %v1984 = vmul.f32 %v1981, %v1983
    %v1985 = vmul.f32 %v1984, 0.044715
    %v1986 = vadd.f32 %v1981, %v1985
    %v1987 = vmul.f32 %v1986, 0.7978846
    %v1988 = vtanh.pop %v1987
    %v1989 = vadd.f32 %v1988, 1.0
    %v1990 = vmul.f32 %v1989, 0.5
    %v1991 = vmul.f32 %v1981, %v1990
    %v1992 = vld [vmem:[%s8] sm:$0xff]
    %v1993 = vld [vmem:[%s8 + $0x8] sm:$0xff]
    %v1994 = vld [vmem:[%s8 + $0x10] sm:$0xff]
    %v1995 = vld [vmem:[%s8 + $0x18] sm:$0xff]
    %v1996 = vld [vmem:[%s9] sm:$0x1]
    %v1998 = vperm.slane %v1996, 0
    %v2001 = vsel %vm312, %v1991, 0
    %2003 = vmatpush.msra.mxu0 0.0
    %2004 = vmatpush.msra.mxu0 0.0
    %2005 = vmatpush.msra.mxu0 0.0
    %2006 = vmatpush.msra.mxu0 0.0
    %2007 = vmatpush.msra.mxu0 0.0
    %2008 = vmatpush.msra.mxu0 0.0
    %2009 = vmatpush.msra.mxu0 0.0
    %2010 = vmatpush.msra.mxu0 0.0
    %2011 = vmatpush.msra.mxu0 0.0
    %2012 = vmatpush.msra.mxu0 0.0
    %2013 = vmatpush.msra.mxu0 0.0
    %2014 = vmatpush.msra.mxu0 0.0
    %2015 = vmatpush.msra.mxu0 %v1995
    %2016 = vmatpush.msra.mxu0 %v1994
    %2017 = vmatpush.msra.mxu0 %v1993
    %2018 = vmatpush.msra.mxu0 %v1992
    %2019 = vmatmul.f32.gmra.mxu0 %v2001
    %v2020 = vpop.f32.mrf.mxu0
    %v2021 = vadd.f32 %v1998, %v2020
    %2022 = vdwg.mxu0
    %vm2023 = vcmask 74752
    %2024 = vst.msk [vmem:[#allocation5] sm:$0x3] %vm2023, %v2021
    // Predicated region
    $region46: #{s4_forward.1} parent=1 // pred_check
      _
    $region47: #{s4_forward.1} parent=1 // pred_check_branch
      %2026 = sbr.rel (0) target = $region49
    $region48: #{s4_forward.1} parent=1 // pred_region
      %2028 = vsyncadd [#allocation4], 0
      %s2030 = sshll.u32 [#allocation5], 4
      %s2031 = int_to_ptr.vmem [resolvable:$true] %s2030
      %s2032 = sshll.u32 %s10, 4
      %s2033 = int_to_ptr.hbm [resolvable:$true] %s2032
      %2035 = dma.vmem_to_hbm [thread:$0]  %s2031, 32, %s2033, [#allocation4]
    $region49: #{s4_forward.1} parent=1 // pred_fallthru
      _
    // Predicated region
    $region50: #{s4_forward.1} parent=1 // pred_check
      _
    $region51: #{s4_forward.1} parent=1 // pred_check_branch
      %2037 = sbr.rel (0) target = $region53
    $region52: #{s4_forward.1} parent=1 // pred_region
      %2039 = dma.done [#allocation4], 32
    $region53: #{s4_forward.1} parent=1 // pred_fallthru
      _
    %2040 = vsyncpa [#allocation3], 1
    %2041 = vsyncpa [#allocation4], 1

</llo_original>
